<compile_context>
chip_gen: v7x
topology: tpu7x:2x2x1
jax: 0.10.0
libtpu: 0.0.40
codegen_flags: <defaults>
</compile_context>

<pallas_src>
import jax
import jax.numpy as jnp
from jax.experimental import pallas as pl
from jax.experimental.pallas import tpu as pltpu

EPS = 1e-5                      # nn.LayerNorm default eps
_SQRT_2_OVER_PI = 0.7978845608028654


def _gelu_tanh(x):
    # tanh-form GELU: 0.5*x*(1 + tanh(sqrt(2/pi)*(x + 0.044715*x^3))).
    return 0.5 * x * (1.0 + jnp.tanh(_SQRT_2_OVER_PI * (x + 0.044715 * x * x * x)))


def blk_cha_comb_kernel(x_ref, w_ref, b_ref, lnw_ref, lnb_ref, out_ref):
    # x_ref  : (tb, C, F)   VMEM
    # w_ref  : (2C*C,)      SMEM  (flattened conv1d weight, row-major [o, c])
    # b_ref  : (2C,)        SMEM  (conv1d bias)
    # lnw_ref: (2C, F)      VMEM  (LayerNorm weight)
    # lnb_ref: (2C, F)      VMEM  (LayerNorm bias)
    # out_ref: (tb, 2C, F)  VMEM
    C = x_ref.shape[1]
    K = out_ref.shape[1]                 # 2C
    F = x_ref.shape[2]
    inv_norm = 1.0 / float(K * F)

    # Per-input-channel slabs, loaded once: (tb, F) each.
    xc = [x_ref[:, c, :] for c in range(C)]

    # ---- 1x1 conv (C -> 2C): SMEM scalar weights + VPU FMAs (no MXU, no kron) ----
    ys = []
    tot = None                           # sum over output channels (for the mean)
    for o in range(K):
        acc = xc[0] * w_ref[o * C + 0]
        for c in range(1, C):
            acc = acc + xc[c] * w_ref[o * C + c]
        acc = acc + b_ref[o]
        ys.append(acc)
        tot = acc if tot is None else tot + acc

    # ---- LayerNorm([2C, F]) per sample: lane-first stats, two-pass variance ----
    mu = jnp.sum(tot, axis=-1, keepdims=True) * inv_norm          # (tb, 1)
    dev = []
    var = None
    for o in range(K):
        d = ys[o] - mu
        dev.append(d)
        v = jnp.sum(d * d, axis=-1, keepdims=True)                # lane reduce (XLU)
        var = v if var is None else var + v
    inv_std = jax.lax.rsqrt(var * inv_norm + EPS)                 # (tb, 1), EUP

    # ---- affine + GELU (tanh form -> EUP); dropout is identity (eval mode) ----
    for o in range(K):
        h = dev[o] * inv_std * lnw_ref[o:o + 1, :] + lnb_ref[o:o + 1, :]
        out_ref[:, o, :] = _gelu_tanh(h).astype(out_ref.dtype)


def _pick_tb(B):
    # Target <=64 samples per grid step (<=512 output rows, near HBM roofline),
    # but keep >=2 grid steps when the batch allows it so both v7x TensorCores
    # get work.  On v5e/v6e (1 TC) the extra step is harmless.
    n_steps = max(2 if B > 8 else 1, pl.cdiv(B, 64))
    return pl.cdiv(B, n_steps)


def blk_cha_comb_forward(x, params, tb=None):
    """x: (B, C, F) float32.
    params = (cov1d.weight (2C,C,1), cov1d.bias (2C,), ln.weight (2C,F), ln.bias (2C,F))."""
    conv_w, conv_b, ln_w, ln_b = params
    B, C, F = x.shape
    twoC = 2 * C

    if tb is None:
        tb = _pick_tb(B)
    n_steps = pl.cdiv(B, tb)
    Bp = n_steps * tb
    if Bp != B:
        x = jnp.pad(x, ((0, Bp - B), (0, 0), (0, 0)))

    x = x.astype(jnp.float32)
    # Tiny host-side prep (flatten / cast only — no kron, no tiling).
    w_flat = conv_w.astype(jnp.float32).reshape(-1)               # (2C*C,) row-major [o, c]
    b_flat = conv_b.astype(jnp.float32)                           # (2C,)
    lnw = ln_w.astype(jnp.float32)                                # (2C, F)
    lnb = ln_b.astype(jnp.float32)                                # (2C, F)

    out = pl.pallas_call(
        blk_cha_comb_kernel,
        out_shape=jax.ShapeDtypeStruct((Bp, twoC, F), jnp.float32),
        grid=(n_steps,),
        in_specs=[
            pl.BlockSpec((tb, C, F), lambda i: (i, 0, 0)),                 # x block
            pl.BlockSpec(memory_space=pltpu.MemorySpace.SMEM),             # conv weight scalars
            pl.BlockSpec(memory_space=pltpu.MemorySpace.SMEM),             # conv bias scalars
            pl.BlockSpec((twoC, F), lambda i: (0, 0)),                     # LN weight (constant)
            pl.BlockSpec((twoC, F), lambda i: (0, 0)),                     # LN bias   (constant)
        ],
        out_specs=pl.BlockSpec((tb, twoC, F), lambda i: (i, 0, 0)),
        compiler_params=pltpu.CompilerParams(
            dimension_semantics=("parallel",)),
    )(x, w_flat, b_flat, lnw, lnb)

    return out[:B] if Bp != B else out


def ref_forward(x, params):
    """Plain-JAX reference reproducing the PyTorch forward (eval mode, exact GELU)."""
    conv_w, conv_b, ln_w, ln_b = params
    y = jnp.einsum('oc,bcf->bof', conv_w[:, :, 0], x) + conv_b[None, :, None]
    mu = jnp.mean(y, axis=(1, 2), keepdims=True)
    var = jnp.mean((y - mu) ** 2, axis=(1, 2), keepdims=True)
    h = (y - mu) / jnp.sqrt(var + EPS) * ln_w[None] + ln_b[None]
    return jax.nn.gelu(h, approximate=False)


if __name__ == "__main__":
    C, F, B = 4, 128, 16            # F = 128 -> lane-dense I/O
    twoC = 2 * C

    key = jax.random.PRNGKey(0)
    keys = jax.random.split(key, 5)
    params = (
        jax.random.normal(keys[0], (twoC, C, 1), jnp.float32) / jnp.sqrt(float(C)),  # cov1d.weight
        0.1 * jax.random.normal(keys[1], (twoC,), jnp.float32),                      # cov1d.bias
        1.0 + 0.1 * jax.random.normal(keys[2], (twoC, F), jnp.float32),              # ln.weight
        0.1 * jax.random.normal(keys[3], (twoC, F), jnp.float32),                    # ln.bias
    )
    x = jax.random.normal(keys[4], (B, C, F), jnp.float32)

    fwd = jax.jit(lambda xx: blk_cha_comb_forward(xx, params))
    out = jax.block_until_ready(fwd(x))

    ref = ref_forward(x, params)
    assert out.shape == (B, twoC, F)
    assert bool(jnp.all(jnp.isfinite(out)))
    max_err = float(jnp.max(jnp.abs(out - ref)))
    assert max_err < 2e-2, f"max abs err {max_err}"

    # TODO(synk): nn.Dropout(config.drop_rate) is treated as identity (inference / eval mode).
    print("KERNEL_OK")
</pallas_src>

<mosaic_0001>
module attributes {stable_mosaic.version = 11 : i64} {
  func.func @blk_cha_comb_kernel(%arg0: i32, %arg1: memref<8x4x128xf32, #tpu.memory_space<vmem>>, %arg2: memref<32xf32, #tpu.memory_space<smem>>, %arg3: memref<8xf32, #tpu.memory_space<smem>>, %arg4: memref<8x128xf32, #tpu.memory_space<vmem>>, %arg5: memref<8x128xf32, #tpu.memory_space<vmem>>, %arg6: memref<8x8x128xf32, #tpu.memory_space<vmem>>) attributes {dimension_semantics = [#tpu.dimension_semantics<parallel>], iteration_bounds = array<i64: 2>, scalar_prefetch = 0 : i64, scratch_operands = 0 : i64, tpu.core_type = #tpu.core_type<tc>, window_params = [{transform_indices = @transform_0, window_bounds = array<i64: 8, 4, 128>}, {transform_indices = @transform_1, window_bounds = array<i64: 32>}, {transform_indices = @transform_2, window_bounds = array<i64: 8>}, {pipeline_mode = #tpu.pipeline_mode<synchronous>, transform_indices = @transform_3, window_bounds = array<i64: 8, 128>}, {pipeline_mode = #tpu.pipeline_mode<synchronous>, transform_indices = @transform_4, window_bounds = array<i64: 8, 128>}, {transform_indices = @transform_5, window_bounds = array<i64: 8, 8, 128>}]} {
    %c0 = arith.constant 0 : index
    %c0_0 = arith.constant 0 : index
    %c0_1 = arith.constant 0 : index
    %0 = vector.load %arg1[%c0, %c0_0, %c0_1] : memref<8x4x128xf32, #tpu.memory_space<vmem>>, vector<8x1x128xf32>
    %1 = vector.shape_cast %0 : vector<8x1x128xf32> to vector<8x128xf32>
    %c0_2 = arith.constant 0 : index
    %c1 = arith.constant 1 : index
    %c0_3 = arith.constant 0 : index
    %2 = vector.load %arg1[%c0_2, %c1, %c0_3] : memref<8x4x128xf32, #tpu.memory_space<vmem>>, vector<8x1x128xf32>
    %3 = vector.shape_cast %2 : vector<8x1x128xf32> to vector<8x128xf32>
    %c0_4 = arith.constant 0 : index
    %c2 = arith.constant 2 : index
    %c0_5 = arith.constant 0 : index
    %4 = vector.load %arg1[%c0_4, %c2, %c0_5] : memref<8x4x128xf32, #tpu.memory_space<vmem>>, vector<8x1x128xf32>
    %5 = vector.shape_cast %4 : vector<8x1x128xf32> to vector<8x128xf32>
    %c0_6 = arith.constant 0 : index
    %c3 = arith.constant 3 : index
    %c0_7 = arith.constant 0 : index
    %6 = vector.load %arg1[%c0_6, %c3, %c0_7] : memref<8x4x128xf32, #tpu.memory_space<vmem>>, vector<8x1x128xf32>
    %7 = vector.shape_cast %6 : vector<8x1x128xf32> to vector<8x128xf32>
    %c0_8 = arith.constant 0 : index
    %8 = memref.load %arg2[%c0_8] : memref<32xf32, #tpu.memory_space<smem>>
    %9 = vector.broadcast %8 : f32 to vector<8x128xf32>
    %10 = arith.mulf %1, %9 : vector<8x128xf32>
    %c1_9 = arith.constant 1 : index
    %11 = memref.load %arg2[%c1_9] : memref<32xf32, #tpu.memory_space<smem>>
    %12 = vector.broadcast %11 : f32 to vector<8x128xf32>
    %13 = arith.mulf %3, %12 : vector<8x128xf32>
    %14 = arith.addf %10, %13 : vector<8x128xf32>
    %c2_10 = arith.constant 2 : index
    %15 = memref.load %arg2[%c2_10] : memref<32xf32, #tpu.memory_space<smem>>
    %16 = vector.broadcast %15 : f32 to vector<8x128xf32>
    %17 = arith.mulf %5, %16 : vector<8x128xf32>
    %18 = arith.addf %14, %17 : vector<8x128xf32>
    %c3_11 = arith.constant 3 : index
    %19 = memref.load %arg2[%c3_11] : memref<32xf32, #tpu.memory_space<smem>>
    %20 = vector.broadcast %19 : f32 to vector<8x128xf32>
    %21 = arith.mulf %7, %20 : vector<8x128xf32>
    %22 = arith.addf %18, %21 : vector<8x128xf32>
    %c0_12 = arith.constant 0 : index
    %23 = memref.load %arg3[%c0_12] : memref<8xf32, #tpu.memory_space<smem>>
    %24 = vector.broadcast %23 : f32 to vector<8x128xf32>
    %25 = arith.addf %22, %24 : vector<8x128xf32>
    %c4 = arith.constant 4 : index
    %26 = memref.load %arg2[%c4] : memref<32xf32, #tpu.memory_space<smem>>
    %27 = vector.broadcast %26 : f32 to vector<8x128xf32>
    %28 = arith.mulf %1, %27 : vector<8x128xf32>
    %c5 = arith.constant 5 : index
    %29 = memref.load %arg2[%c5] : memref<32xf32, #tpu.memory_space<smem>>
    %30 = vector.broadcast %29 : f32 to vector<8x128xf32>
    %31 = arith.mulf %3, %30 : vector<8x128xf32>
    %32 = arith.addf %28, %31 : vector<8x128xf32>
    %c6 = arith.constant 6 : index
    %33 = memref.load %arg2[%c6] : memref<32xf32, #tpu.memory_space<smem>>
    %34 = vector.broadcast %33 : f32 to vector<8x128xf32>
    %35 = arith.mulf %5, %34 : vector<8x128xf32>
    %36 = arith.addf %32, %35 : vector<8x128xf32>
    %c7 = arith.constant 7 : index
    %37 = memref.load %arg2[%c7] : memref<32xf32, #tpu.memory_space<smem>>
    %38 = vector.broadcast %37 : f32 to vector<8x128xf32>
    %39 = arith.mulf %7, %38 : vector<8x128xf32>
    %40 = arith.addf %36, %39 : vector<8x128xf32>
    %c1_13 = arith.constant 1 : index
    %41 = memref.load %arg3[%c1_13] : memref<8xf32, #tpu.memory_space<smem>>
    %42 = vector.broadcast %41 : f32 to vector<8x128xf32>
    %43 = arith.addf %40, %42 : vector<8x128xf32>
    %44 = arith.addf %25, %43 : vector<8x128xf32>
    %c8 = arith.constant 8 : index
    %45 = memref.load %arg2[%c8] : memref<32xf32, #tpu.memory_space<smem>>
    %46 = vector.broadcast %45 : f32 to vector<8x128xf32>
    %47 = arith.mulf %1, %46 : vector<8x128xf32>
    %c9 = arith.constant 9 : index
    %48 = memref.load %arg2[%c9] : memref<32xf32, #tpu.memory_space<smem>>
    %49 = vector.broadcast %48 : f32 to vector<8x128xf32>
    %50 = arith.mulf %3, %49 : vector<8x128xf32>
    %51 = arith.addf %47, %50 : vector<8x128xf32>
    %c10 = arith.constant 10 : index
    %52 = memref.load %arg2[%c10] : memref<32xf32, #tpu.memory_space<smem>>
    %53 = vector.broadcast %52 : f32 to vector<8x128xf32>
    %54 = arith.mulf %5, %53 : vector<8x128xf32>
    %55 = arith.addf %51, %54 : vector<8x128xf32>
    %c11 = arith.constant 11 : index
    %56 = memref.load %arg2[%c11] : memref<32xf32, #tpu.memory_space<smem>>
    %57 = vector.broadcast %56 : f32 to vector<8x128xf32>
    %58 = arith.mulf %7, %57 : vector<8x128xf32>
    %59 = arith.addf %55, %58 : vector<8x128xf32>
    %c2_14 = arith.constant 2 : index
    %60 = memref.load %arg3[%c2_14] : memref<8xf32, #tpu.memory_space<smem>>
    %61 = vector.broadcast %60 : f32 to vector<8x128xf32>
    %62 = arith.addf %59, %61 : vector<8x128xf32>
    %63 = arith.addf %44, %62 : vector<8x128xf32>
    %c12 = arith.constant 12 : index
    %64 = memref.load %arg2[%c12] : memref<32xf32, #tpu.memory_space<smem>>
    %65 = vector.broadcast %64 : f32 to vector<8x128xf32>
    %66 = arith.mulf %1, %65 : vector<8x128xf32>
    %c13 = arith.constant 13 : index
    %67 = memref.load %arg2[%c13] : memref<32xf32, #tpu.memory_space<smem>>
    %68 = vector.broadcast %67 : f32 to vector<8x128xf32>
    %69 = arith.mulf %3, %68 : vector<8x128xf32>
    %70 = arith.addf %66, %69 : vector<8x128xf32>
    %c14 = arith.constant 14 : index
    %71 = memref.load %arg2[%c14] : memref<32xf32, #tpu.memory_space<smem>>
    %72 = vector.broadcast %71 : f32 to vector<8x128xf32>
    %73 = arith.mulf %5, %72 : vector<8x128xf32>
    %74 = arith.addf %70, %73 : vector<8x128xf32>
    %c15 = arith.constant 15 : index
    %75 = memref.load %arg2[%c15] : memref<32xf32, #tpu.memory_space<smem>>
    %76 = vector.broadcast %75 : f32 to vector<8x128xf32>
    %77 = arith.mulf %7, %76 : vector<8x128xf32>
    %78 = arith.addf %74, %77 : vector<8x128xf32>
    %c3_15 = arith.constant 3 : index
    %79 = memref.load %arg3[%c3_15] : memref<8xf32, #tpu.memory_space<smem>>
    %80 = vector.broadcast %79 : f32 to vector<8x128xf32>
    %81 = arith.addf %78, %80 : vector<8x128xf32>
    %82 = arith.addf %63, %81 : vector<8x128xf32>
    %c16 = arith.constant 16 : index
    %83 = memref.load %arg2[%c16] : memref<32xf32, #tpu.memory_space<smem>>
    %84 = vector.broadcast %83 : f32 to vector<8x128xf32>
    %85 = arith.mulf %1, %84 : vector<8x128xf32>
    %c17 = arith.constant 17 : index
    %86 = memref.load %arg2[%c17] : memref<32xf32, #tpu.memory_space<smem>>
    %87 = vector.broadcast %86 : f32 to vector<8x128xf32>
    %88 = arith.mulf %3, %87 : vector<8x128xf32>
    %89 = arith.addf %85, %88 : vector<8x128xf32>
    %c18 = arith.constant 18 : index
    %90 = memref.load %arg2[%c18] : memref<32xf32, #tpu.memory_space<smem>>
    %91 = vector.broadcast %90 : f32 to vector<8x128xf32>
    %92 = arith.mulf %5, %91 : vector<8x128xf32>
    %93 = arith.addf %89, %92 : vector<8x128xf32>
    %c19 = arith.constant 19 : index
    %94 = memref.load %arg2[%c19] : memref<32xf32, #tpu.memory_space<smem>>
    %95 = vector.broadcast %94 : f32 to vector<8x128xf32>
    %96 = arith.mulf %7, %95 : vector<8x128xf32>
    %97 = arith.addf %93, %96 : vector<8x128xf32>
    %c4_16 = arith.constant 4 : index
    %98 = memref.load %arg3[%c4_16] : memref<8xf32, #tpu.memory_space<smem>>
    %99 = vector.broadcast %98 : f32 to vector<8x128xf32>
    %100 = arith.addf %97, %99 : vector<8x128xf32>
    %101 = arith.addf %82, %100 : vector<8x128xf32>
    %c20 = arith.constant 20 : index
    %102 = memref.load %arg2[%c20] : memref<32xf32, #tpu.memory_space<smem>>
    %103 = vector.broadcast %102 : f32 to vector<8x128xf32>
    %104 = arith.mulf %1, %103 : vector<8x128xf32>
    %c21 = arith.constant 21 : index
    %105 = memref.load %arg2[%c21] : memref<32xf32, #tpu.memory_space<smem>>
    %106 = vector.broadcast %105 : f32 to vector<8x128xf32>
    %107 = arith.mulf %3, %106 : vector<8x128xf32>
    %108 = arith.addf %104, %107 : vector<8x128xf32>
    %c22 = arith.constant 22 : index
    %109 = memref.load %arg2[%c22] : memref<32xf32, #tpu.memory_space<smem>>
    %110 = vector.broadcast %109 : f32 to vector<8x128xf32>
    %111 = arith.mulf %5, %110 : vector<8x128xf32>
    %112 = arith.addf %108, %111 : vector<8x128xf32>
    %c23 = arith.constant 23 : index
    %113 = memref.load %arg2[%c23] : memref<32xf32, #tpu.memory_space<smem>>
    %114 = vector.broadcast %113 : f32 to vector<8x128xf32>
    %115 = arith.mulf %7, %114 : vector<8x128xf32>
    %116 = arith.addf %112, %115 : vector<8x128xf32>
    %c5_17 = arith.constant 5 : index
    %117 = memref.load %arg3[%c5_17] : memref<8xf32, #tpu.memory_space<smem>>
    %118 = vector.broadcast %117 : f32 to vector<8x128xf32>
    %119 = arith.addf %116, %118 : vector<8x128xf32>
    %120 = arith.addf %101, %119 : vector<8x128xf32>
    %c24 = arith.constant 24 : index
    %121 = memref.load %arg2[%c24] : memref<32xf32, #tpu.memory_space<smem>>
    %122 = vector.broadcast %121 : f32 to vector<8x128xf32>
    %123 = arith.mulf %1, %122 : vector<8x128xf32>
    %c25 = arith.constant 25 : index
    %124 = memref.load %arg2[%c25] : memref<32xf32, #tpu.memory_space<smem>>
    %125 = vector.broadcast %124 : f32 to vector<8x128xf32>
    %126 = arith.mulf %3, %125 : vector<8x128xf32>
    %127 = arith.addf %123, %126 : vector<8x128xf32>
    %c26 = arith.constant 26 : index
    %128 = memref.load %arg2[%c26] : memref<32xf32, #tpu.memory_space<smem>>
    %129 = vector.broadcast %128 : f32 to vector<8x128xf32>
    %130 = arith.mulf %5, %129 : vector<8x128xf32>
    %131 = arith.addf %127, %130 : vector<8x128xf32>
    %c27 = arith.constant 27 : index
    %132 = memref.load %arg2[%c27] : memref<32xf32, #tpu.memory_space<smem>>
    %133 = vector.broadcast %132 : f32 to vector<8x128xf32>
    %134 = arith.mulf %7, %133 : vector<8x128xf32>
    %135 = arith.addf %131, %134 : vector<8x128xf32>
    %c6_18 = arith.constant 6 : index
    %136 = memref.load %arg3[%c6_18] : memref<8xf32, #tpu.memory_space<smem>>
    %137 = vector.broadcast %136 : f32 to vector<8x128xf32>
    %138 = arith.addf %135, %137 : vector<8x128xf32>
    %139 = arith.addf %120, %138 : vector<8x128xf32>
    %c28 = arith.constant 28 : index
    %140 = memref.load %arg2[%c28] : memref<32xf32, #tpu.memory_space<smem>>
    %141 = vector.broadcast %140 : f32 to vector<8x128xf32>
    %142 = arith.mulf %1, %141 : vector<8x128xf32>
    %c29 = arith.constant 29 : index
    %143 = memref.load %arg2[%c29] : memref<32xf32, #tpu.memory_space<smem>>
    %144 = vector.broadcast %143 : f32 to vector<8x128xf32>
    %145 = arith.mulf %3, %144 : vector<8x128xf32>
    %146 = arith.addf %142, %145 : vector<8x128xf32>
    %c30 = arith.constant 30 : index
    %147 = memref.load %arg2[%c30] : memref<32xf32, #tpu.memory_space<smem>>
    %148 = vector.broadcast %147 : f32 to vector<8x128xf32>
    %149 = arith.mulf %5, %148 : vector<8x128xf32>
    %150 = arith.addf %146, %149 : vector<8x128xf32>
    %c31 = arith.constant 31 : index
    %151 = memref.load %arg2[%c31] : memref<32xf32, #tpu.memory_space<smem>>
    %152 = vector.broadcast %151 : f32 to vector<8x128xf32>
    %153 = arith.mulf %7, %152 : vector<8x128xf32>
    %154 = arith.addf %150, %153 : vector<8x128xf32>
    %c7_19 = arith.constant 7 : index
    %155 = memref.load %arg3[%c7_19] : memref<8xf32, #tpu.memory_space<smem>>
    %156 = vector.broadcast %155 : f32 to vector<8x128xf32>
    %157 = arith.addf %154, %156 : vector<8x128xf32>
    %158 = arith.addf %139, %157 : vector<8x128xf32>
    %cst = arith.constant dense<0.000000e+00> : vector<8xf32>
    %159 = vector.multi_reduction <add>, %158, %cst [1] : vector<8x128xf32> to vector<8xf32>
    %160 = vector.shape_cast %159 : vector<8xf32> to vector<8x1xf32>
    %cst_20 = arith.constant 9.765625E-4 : f32
    %161 = vector.broadcast %cst_20 : f32 to vector<8x1xf32>
    %162 = arith.mulf %160, %161 : vector<8x1xf32>
    %163 = vector.broadcast %162 : vector<8x1xf32> to vector<8x128xf32>
    %164 = arith.subf %25, %163 : vector<8x128xf32>
    %165 = arith.mulf %164, %164 : vector<8x128xf32>
    %cst_21 = arith.constant dense<0.000000e+00> : vector<8xf32>
    %166 = vector.multi_reduction <add>, %165, %cst_21 [1] : vector<8x128xf32> to vector<8xf32>
    %167 = vector.shape_cast %166 : vector<8xf32> to vector<8x1xf32>
    %168 = vector.broadcast %162 : vector<8x1xf32> to vector<8x128xf32>
    %169 = arith.subf %43, %168 : vector<8x128xf32>
    %170 = arith.mulf %169, %169 : vector<8x128xf32>
    %cst_22 = arith.constant dense<0.000000e+00> : vector<8xf32>
    %171 = vector.multi_reduction <add>, %170, %cst_22 [1] : vector<8x128xf32> to vector<8xf32>
    %172 = vector.shape_cast %171 : vector<8xf32> to vector<8x1xf32>
    %173 = arith.addf %167, %172 : vector<8x1xf32>
    %174 = vector.broadcast %162 : vector<8x1xf32> to vector<8x128xf32>
    %175 = arith.subf %62, %174 : vector<8x128xf32>
    %176 = arith.mulf %175, %175 : vector<8x128xf32>
    %cst_23 = arith.constant dense<0.000000e+00> : vector<8xf32>
    %177 = vector.multi_reduction <add>, %176, %cst_23 [1] : vector<8x128xf32> to vector<8xf32>
    %178 = vector.shape_cast %177 : vector<8xf32> to vector<8x1xf32>
    %179 = arith.addf %173, %178 : vector<8x1xf32>
    %180 = vector.broadcast %162 : vector<8x1xf32> to vector<8x128xf32>
    %181 = arith.subf %81, %180 : vector<8x128xf32>
    %182 = arith.mulf %181, %181 : vector<8x128xf32>
    %cst_24 = arith.constant dense<0.000000e+00> : vector<8xf32>
    %183 = vector.multi_reduction <add>, %182, %cst_24 [1] : vector<8x128xf32> to vector<8xf32>
    %184 = vector.shape_cast %183 : vector<8xf32> to vector<8x1xf32>
    %185 = arith.addf %179, %184 : vector<8x1xf32>
    %186 = vector.broadcast %162 : vector<8x1xf32> to vector<8x128xf32>
    %187 = arith.subf %100, %186 : vector<8x128xf32>
    %188 = arith.mulf %187, %187 : vector<8x128xf32>
    %cst_25 = arith.constant dense<0.000000e+00> : vector<8xf32>
    %189 = vector.multi_reduction <add>, %188, %cst_25 [1] : vector<8x128xf32> to vector<8xf32>
    %190 = vector.shape_cast %189 : vector<8xf32> to vector<8x1xf32>
    %191 = arith.addf %185, %190 : vector<8x1xf32>
    %192 = vector.broadcast %162 : vector<8x1xf32> to vector<8x128xf32>
    %193 = arith.subf %119, %192 : vector<8x128xf32>
    %194 = arith.mulf %193, %193 : vector<8x128xf32>
    %cst_26 = arith.constant dense<0.000000e+00> : vector<8xf32>
    %195 = vector.multi_reduction <add>, %194, %cst_26 [1] : vector<8x128xf32> to vector<8xf32>
    %196 = vector.shape_cast %195 : vector<8xf32> to vector<8x1xf32>
    %197 = arith.addf %191, %196 : vector<8x1xf32>
    %198 = vector.broadcast %162 : vector<8x1xf32> to vector<8x128xf32>
    %199 = arith.subf %138, %198 : vector<8x128xf32>
    %200 = arith.mulf %199, %199 : vector<8x128xf32>
    %cst_27 = arith.constant dense<0.000000e+00> : vector<8xf32>
    %201 = vector.multi_reduction <add>, %200, %cst_27 [1] : vector<8x128xf32> to vector<8xf32>
    %202 = vector.shape_cast %201 : vector<8xf32> to vector<8x1xf32>
    %203 = arith.addf %197, %202 : vector<8x1xf32>
    %204 = vector.broadcast %162 : vector<8x1xf32> to vector<8x128xf32>
    %205 = arith.subf %157, %204 : vector<8x128xf32>
    %206 = arith.mulf %205, %205 : vector<8x128xf32>
    %cst_28 = arith.constant dense<0.000000e+00> : vector<8xf32>
    %207 = vector.multi_reduction <add>, %206, %cst_28 [1] : vector<8x128xf32> to vector<8xf32>
    %208 = vector.shape_cast %207 : vector<8xf32> to vector<8x1xf32>
    %209 = arith.addf %203, %208 : vector<8x1xf32>
    %cst_29 = arith.constant 9.765625E-4 : f32
    %210 = vector.broadcast %cst_29 : f32 to vector<8x1xf32>
    %211 = arith.mulf %209, %210 : vector<8x1xf32>
    %cst_30 = arith.constant 9.99999974E-6 : f32
    %212 = vector.broadcast %cst_30 : f32 to vector<8x1xf32>
    %213 = arith.addf %211, %212 : vector<8x1xf32>
    %214 = math.rsqrt %213 : vector<8x1xf32>
    %215 = vector.broadcast %214 : vector<8x1xf32> to vector<8x128xf32>
    %216 = arith.mulf %164, %215 : vector<8x128xf32>
    %c0_31 = arith.constant 0 : index
    %c0_32 = arith.constant 0 : index
    %217 = vector.load %arg4[%c0_31, %c0_32] : memref<8x128xf32, #tpu.memory_space<vmem>>, vector<1x128xf32>
    %218 = vector.broadcast %217 : vector<1x128xf32> to vector<8x128xf32>
    %219 = arith.mulf %216, %218 : vector<8x128xf32>
    %c0_33 = arith.constant 0 : index
    %c0_34 = arith.constant 0 : index
    %220 = vector.load %arg5[%c0_33, %c0_34] : memref<8x128xf32, #tpu.memory_space<vmem>>, vector<1x128xf32>
    %221 = vector.broadcast %220 : vector<1x128xf32> to vector<8x128xf32>
    %222 = arith.addf %219, %221 : vector<8x128xf32>
    %cst_35 = arith.constant 5.000000e-01 : f32
    %223 = vector.broadcast %cst_35 : f32 to vector<8x128xf32>
    %224 = arith.mulf %223, %222 : vector<8x128xf32>
    %cst_36 = arith.constant 4.471500e-02 : f32
    %225 = vector.broadcast %cst_36 : f32 to vector<8x128xf32>
    %226 = arith.mulf %225, %222 : vector<8x128xf32>
    %227 = arith.mulf %226, %222 : vector<8x128xf32>
    %228 = arith.mulf %227, %222 : vector<8x128xf32>
    %229 = arith.addf %222, %228 : vector<8x128xf32>
    %cst_37 = arith.constant 0.797884583 : f32
    %230 = vector.broadcast %cst_37 : f32 to vector<8x128xf32>
    %231 = arith.mulf %230, %229 : vector<8x128xf32>
    %232 = math.tanh %231 : vector<8x128xf32>
    %cst_38 = arith.constant 1.000000e+00 : f32
    %233 = vector.broadcast %cst_38 : f32 to vector<8x128xf32>
    %234 = arith.addf %233, %232 : vector<8x128xf32>
    %235 = arith.mulf %224, %234 : vector<8x128xf32>
    %c0_39 = arith.constant 0 : index
    %c0_40 = arith.constant 0 : index
    %c0_41 = arith.constant 0 : index
    %236 = vector.load %arg6[%c0_39, %c0_40, %c0_41] : memref<8x8x128xf32, #tpu.memory_space<vmem>>, vector<8x1x128xf32>
    %237 = vector.shape_cast %236 : vector<8x1x128xf32> to vector<8x128xf32>
    %238 = vector.shape_cast %235 : vector<8x128xf32> to vector<8x1x128xf32>
    tpu.vector_store %arg6[%c0_39, %c0_40, %c0_41], %238 {strides = array<i32>} : memref<8x8x128xf32, #tpu.memory_space<vmem>>, vector<8x1x128xf32>,
    %239 = vector.broadcast %214 : vector<8x1xf32> to vector<8x128xf32>
    %240 = arith.mulf %169, %239 : vector<8x128xf32>
    %c1_42 = arith.constant 1 : index
    %c0_43 = arith.constant 0 : index
    %241 = vector.load %arg4[%c1_42, %c0_43] : memref<8x128xf32, #tpu.memory_space<vmem>>, vector<1x128xf32>
    %242 = vector.broadcast %241 : vector<1x128xf32> to vector<8x128xf32>
    %243 = arith.mulf %240, %242 : vector<8x128xf32>
    %c1_44 = arith.constant 1 : index
    %c0_45 = arith.constant 0 : index
    %244 = vector.load %arg5[%c1_44, %c0_45] : memref<8x128xf32, #tpu.memory_space<vmem>>, vector<1x128xf32>
    %245 = vector.broadcast %244 : vector<1x128xf32> to vector<8x128xf32>
    %246 = arith.addf %243, %245 : vector<8x128xf32>
    %cst_46 = arith.constant 5.000000e-01 : f32
    %247 = vector.broadcast %cst_46 : f32 to vector<8x128xf32>
    %248 = arith.mulf %247, %246 : vector<8x128xf32>
    %cst_47 = arith.constant 4.471500e-02 : f32
    %249 = vector.broadcast %cst_47 : f32 to vector<8x128xf32>
    %250 = arith.mulf %249, %246 : vector<8x128xf32>
    %251 = arith.mulf %250, %246 : vector<8x128xf32>
    %252 = arith.mulf %251, %246 : vector<8x128xf32>
    %253 = arith.addf %246, %252 : vector<8x128xf32>
    %cst_48 = arith.constant 0.797884583 : f32
    %254 = vector.broadcast %cst_48 : f32 to vector<8x128xf32>
    %255 = arith.mulf %254, %253 : vector<8x128xf32>
    %256 = math.tanh %255 : vector<8x128xf32>
    %cst_49 = arith.constant 1.000000e+00 : f32
    %257 = vector.broadcast %cst_49 : f32 to vector<8x128xf32>
    %258 = arith.addf %257, %256 : vector<8x128xf32>
    %259 = arith.mulf %248, %258 : vector<8x128xf32>
    %c0_50 = arith.constant 0 : index
    %c1_51 = arith.constant 1 : index
    %c0_52 = arith.constant 0 : index
    %260 = vector.load %arg6[%c0_50, %c1_51, %c0_52] : memref<8x8x128xf32, #tpu.memory_space<vmem>>, vector<8x1x128xf32>
    %261 = vector.shape_cast %260 : vector<8x1x128xf32> to vector<8x128xf32>
    %262 = vector.shape_cast %259 : vector<8x128xf32> to vector<8x1x128xf32>
    tpu.vector_store %arg6[%c0_50, %c1_51, %c0_52], %262 {strides = array<i32>} : memref<8x8x128xf32, #tpu.memory_space<vmem>>, vector<8x1x128xf32>,
    %263 = vector.broadcast %214 : vector<8x1xf32> to vector<8x128xf32>
    %264 = arith.mulf %175, %263 : vector<8x128xf32>
    %c2_53 = arith.constant 2 : index
    %c0_54 = arith.constant 0 : index
    %265 = vector.load %arg4[%c2_53, %c0_54] : memref<8x128xf32, #tpu.memory_space<vmem>>, vector<1x128xf32>
    %266 = vector.broadcast %265 : vector<1x128xf32> to vector<8x128xf32>
    %267 = arith.mulf %264, %266 : vector<8x128xf32>
    %c2_55 = arith.constant 2 : index
    %c0_56 = arith.constant 0 : index
    %268 = vector.load %arg5[%c2_55, %c0_56] : memref<8x128xf32, #tpu.memory_space<vmem>>, vector<1x128xf32>
    %269 = vector.broadcast %268 : vector<1x128xf32> to vector<8x128xf32>
    %270 = arith.addf %267, %269 : vector<8x128xf32>
    %cst_57 = arith.constant 5.000000e-01 : f32
    %271 = vector.broadcast %cst_57 : f32 to vector<8x128xf32>
    %272 = arith.mulf %271, %270 : vector<8x128xf32>
    %cst_58 = arith.constant 4.471500e-02 : f32
    %273 = vector.broadcast %cst_58 : f32 to vector<8x128xf32>
    %274 = arith.mulf %273, %270 : vector<8x128xf32>
    %275 = arith.mulf %274, %270 : vector<8x128xf32>
    %276 = arith.mulf %275, %270 : vector<8x128xf32>
    %277 = arith.addf %270, %276 : vector<8x128xf32>
    %cst_59 = arith.constant 0.797884583 : f32
    %278 = vector.broadcast %cst_59 : f32 to vector<8x128xf32>
    %279 = arith.mulf %278, %277 : vector<8x128xf32>
    %280 = math.tanh %279 : vector<8x128xf32>
    %cst_60 = arith.constant 1.000000e+00 : f32
    %281 = vector.broadcast %cst_60 : f32 to vector<8x128xf32>
    %282 = arith.addf %281, %280 : vector<8x128xf32>
    %283 = arith.mulf %272, %282 : vector<8x128xf32>
    %c0_61 = arith.constant 0 : index
    %c2_62 = arith.constant 2 : index
    %c0_63 = arith.constant 0 : index
    %284 = vector.load %arg6[%c0_61, %c2_62, %c0_63] : memref<8x8x128xf32, #tpu.memory_space<vmem>>, vector<8x1x128xf32>
    %285 = vector.shape_cast %284 : vector<8x1x128xf32> to vector<8x128xf32>
    %286 = vector.shape_cast %283 : vector<8x128xf32> to vector<8x1x128xf32>
    tpu.vector_store %arg6[%c0_61, %c2_62, %c0_63], %286 {strides = array<i32>} : memref<8x8x128xf32, #tpu.memory_space<vmem>>, vector<8x1x128xf32>,
    %287 = vector.broadcast %214 : vector<8x1xf32> to vector<8x128xf32>
    %288 = arith.mulf %181, %287 : vector<8x128xf32>
    %c3_64 = arith.constant 3 : index
    %c0_65 = arith.constant 0 : index
    %289 = vector.load %arg4[%c3_64, %c0_65] : memref<8x128xf32, #tpu.memory_space<vmem>>, vector<1x128xf32>
    %290 = vector.broadcast %289 : vector<1x128xf32> to vector<8x128xf32>
    %291 = arith.mulf %288, %290 : vector<8x128xf32>
    %c3_66 = arith.constant 3 : index
    %c0_67 = arith.constant 0 : index
    %292 = vector.load %arg5[%c3_66, %c0_67] : memref<8x128xf32, #tpu.memory_space<vmem>>, vector<1x128xf32>
    %293 = vector.broadcast %292 : vector<1x128xf32> to vector<8x128xf32>
    %294 = arith.addf %291, %293 : vector<8x128xf32>
    %cst_68 = arith.constant 5.000000e-01 : f32
    %295 = vector.broadcast %cst_68 : f32 to vector<8x128xf32>
    %296 = arith.mulf %295, %294 : vector<8x128xf32>
    %cst_69 = arith.constant 4.471500e-02 : f32
    %297 = vector.broadcast %cst_69 : f32 to vector<8x128xf32>
    %298 = arith.mulf %297, %294 : vector<8x128xf32>
    %299 = arith.mulf %298, %294 : vector<8x128xf32>
    %300 = arith.mulf %299, %294 : vector<8x128xf32>
    %301 = arith.addf %294, %300 : vector<8x128xf32>
    %cst_70 = arith.constant 0.797884583 : f32
    %302 = vector.broadcast %cst_70 : f32 to vector<8x128xf32>
    %303 = arith.mulf %302, %301 : vector<8x128xf32>
    %304 = math.tanh %303 : vector<8x128xf32>
    %cst_71 = arith.constant 1.000000e+00 : f32
    %305 = vector.broadcast %cst_71 : f32 to vector<8x128xf32>
    %306 = arith.addf %305, %304 : vector<8x128xf32>
    %307 = arith.mulf %296, %306 : vector<8x128xf32>
    %c0_72 = arith.constant 0 : index
    %c3_73 = arith.constant 3 : index
    %c0_74 = arith.constant 0 : index
    %308 = vector.load %arg6[%c0_72, %c3_73, %c0_74] : memref<8x8x128xf32, #tpu.memory_space<vmem>>, vector<8x1x128xf32>
    %309 = vector.shape_cast %308 : vector<8x1x128xf32> to vector<8x128xf32>
    %310 = vector.shape_cast %307 : vector<8x128xf32> to vector<8x1x128xf32>
    tpu.vector_store %arg6[%c0_72, %c3_73, %c0_74], %310 {strides = array<i32>} : memref<8x8x128xf32, #tpu.memory_space<vmem>>, vector<8x1x128xf32>,
    %311 = vector.broadcast %214 : vector<8x1xf32> to vector<8x128xf32>
    %312 = arith.mulf %187, %311 : vector<8x128xf32>
    %c4_75 = arith.constant 4 : index
    %c0_76 = arith.constant 0 : index
    %313 = vector.load %arg4[%c4_75, %c0_76] : memref<8x128xf32, #tpu.memory_space<vmem>>, vector<1x128xf32>
    %314 = vector.broadcast %313 : vector<1x128xf32> to vector<8x128xf32>
    %315 = arith.mulf %312, %314 : vector<8x128xf32>
    %c4_77 = arith.constant 4 : index
    %c0_78 = arith.constant 0 : index
    %316 = vector.load %arg5[%c4_77, %c0_78] : memref<8x128xf32, #tpu.memory_space<vmem>>, vector<1x128xf32>
    %317 = vector.broadcast %316 : vector<1x128xf32> to vector<8x128xf32>
    %318 = arith.addf %315, %317 : vector<8x128xf32>
    %cst_79 = arith.constant 5.000000e-01 : f32
    %319 = vector.broadcast %cst_79 : f32 to vector<8x128xf32>
    %320 = arith.mulf %319, %318 : vector<8x128xf32>
    %cst_80 = arith.constant 4.471500e-02 : f32
    %321 = vector.broadcast %cst_80 : f32 to vector<8x128xf32>
    %322 = arith.mulf %321, %318 : vector<8x128xf32>
    %323 = arith.mulf %322, %318 : vector<8x128xf32>
    %324 = arith.mulf %323, %318 : vector<8x128xf32>
    %325 = arith.addf %318, %324 : vector<8x128xf32>
    %cst_81 = arith.constant 0.797884583 : f32
    %326 = vector.broadcast %cst_81 : f32 to vector<8x128xf32>
    %327 = arith.mulf %326, %325 : vector<8x128xf32>
    %328 = math.tanh %327 : vector<8x128xf32>
    %cst_82 = arith.constant 1.000000e+00 : f32
    %329 = vector.broadcast %cst_82 : f32 to vector<8x128xf32>
    %330 = arith.addf %329, %328 : vector<8x128xf32>
    %331 = arith.mulf %320, %330 : vector<8x128xf32>
    %c0_83 = arith.constant 0 : index
    %c4_84 = arith.constant 4 : index
    %c0_85 = arith.constant 0 : index
    %332 = vector.load %arg6[%c0_83, %c4_84, %c0_85] : memref<8x8x128xf32, #tpu.memory_space<vmem>>, vector<8x1x128xf32>
    %333 = vector.shape_cast %332 : vector<8x1x128xf32> to vector<8x128xf32>
    %334 = vector.shape_cast %331 : vector<8x128xf32> to vector<8x1x128xf32>
    tpu.vector_store %arg6[%c0_83, %c4_84, %c0_85], %334 {strides = array<i32>} : memref<8x8x128xf32, #tpu.memory_space<vmem>>, vector<8x1x128xf32>,
    %335 = vector.broadcast %214 : vector<8x1xf32> to vector<8x128xf32>
    %336 = arith.mulf %193, %335 : vector<8x128xf32>
    %c5_86 = arith.constant 5 : index
    %c0_87 = arith.constant 0 : index
    %337 = vector.load %arg4[%c5_86, %c0_87] : memref<8x128xf32, #tpu.memory_space<vmem>>, vector<1x128xf32>
    %338 = vector.broadcast %337 : vector<1x128xf32> to vector<8x128xf32>
    %339 = arith.mulf %336, %338 : vector<8x128xf32>
    %c5_88 = arith.constant 5 : index
    %c0_89 = arith.constant 0 : index
    %340 = vector.load %arg5[%c5_88, %c0_89] : memref<8x128xf32, #tpu.memory_space<vmem>>, vector<1x128xf32>
    %341 = vector.broadcast %340 : vector<1x128xf32> to vector<8x128xf32>
    %342 = arith.addf %339, %341 : vector<8x128xf32>
    %cst_90 = arith.constant 5.000000e-01 : f32
    %343 = vector.broadcast %cst_90 : f32 to vector<8x128xf32>
    %344 = arith.mulf %343, %342 : vector<8x128xf32>
    %cst_91 = arith.constant 4.471500e-02 : f32
    %345 = vector.broadcast %cst_91 : f32 to vector<8x128xf32>
    %346 = arith.mulf %345, %342 : vector<8x128xf32>
    %347 = arith.mulf %346, %342 : vector<8x128xf32>
    %348 = arith.mulf %347, %342 : vector<8x128xf32>
    %349 = arith.addf %342, %348 : vector<8x128xf32>
    %cst_92 = arith.constant 0.797884583 : f32
    %350 = vector.broadcast %cst_92 : f32 to vector<8x128xf32>
    %351 = arith.mulf %350, %349 : vector<8x128xf32>
    %352 = math.tanh %351 : vector<8x128xf32>
    %cst_93 = arith.constant 1.000000e+00 : f32
    %353 = vector.broadcast %cst_93 : f32 to vector<8x128xf32>
    %354 = arith.addf %353, %352 : vector<8x128xf32>
    %355 = arith.mulf %344, %354 : vector<8x128xf32>
    %c0_94 = arith.constant 0 : index
    %c5_95 = arith.constant 5 : index
    %c0_96 = arith.constant 0 : index
    %356 = vector.load %arg6[%c0_94, %c5_95, %c0_96] : memref<8x8x128xf32, #tpu.memory_space<vmem>>, vector<8x1x128xf32>
    %357 = vector.shape_cast %356 : vector<8x1x128xf32> to vector<8x128xf32>
    %358 = vector.shape_cast %355 : vector<8x128xf32> to vector<8x1x128xf32>
    tpu.vector_store %arg6[%c0_94, %c5_95, %c0_96], %358 {strides = array<i32>} : memref<8x8x128xf32, #tpu.memory_space<vmem>>, vector<8x1x128xf32>,
    %359 = vector.broadcast %214 : vector<8x1xf32> to vector<8x128xf32>
    %360 = arith.mulf %199, %359 : vector<8x128xf32>
    %c6_97 = arith.constant 6 : index
    %c0_98 = arith.constant 0 : index
    %361 = vector.load %arg4[%c6_97, %c0_98] : memref<8x128xf32, #tpu.memory_space<vmem>>, vector<1x128xf32>
    %362 = vector.broadcast %361 : vector<1x128xf32> to vector<8x128xf32>
    %363 = arith.mulf %360, %362 : vector<8x128xf32>
    %c6_99 = arith.constant 6 : index
    %c0_100 = arith.constant 0 : index
    %364 = vector.load %arg5[%c6_99, %c0_100] : memref<8x128xf32, #tpu.memory_space<vmem>>, vector<1x128xf32>
    %365 = vector.broadcast %364 : vector<1x128xf32> to vector<8x128xf32>
    %366 = arith.addf %363, %365 : vector<8x128xf32>
    %cst_101 = arith.constant 5.000000e-01 : f32
    %367 = vector.broadcast %cst_101 : f32 to vector<8x128xf32>
    %368 = arith.mulf %367, %366 : vector<8x128xf32>
    %cst_102 = arith.constant 4.471500e-02 : f32
    %369 = vector.broadcast %cst_102 : f32 to vector<8x128xf32>
    %370 = arith.mulf %369, %366 : vector<8x128xf32>
    %371 = arith.mulf %370, %366 : vector<8x128xf32>
    %372 = arith.mulf %371, %366 : vector<8x128xf32>
    %373 = arith.addf %366, %372 : vector<8x128xf32>
    %cst_103 = arith.constant 0.797884583 : f32
    %374 = vector.broadcast %cst_103 : f32 to vector<8x128xf32>
    %375 = arith.mulf %374, %373 : vector<8x128xf32>
    %376 = math.tanh %375 : vector<8x128xf32>
    %cst_104 = arith.constant 1.000000e+00 : f32
    %377 = vector.broadcast %cst_104 : f32 to vector<8x128xf32>
    %378 = arith.addf %377, %376 : vector<8x128xf32>
    %379 = arith.mulf %368, %378 : vector<8x128xf32>
    %c0_105 = arith.constant 0 : index
    %c6_106 = arith.constant 6 : index
    %c0_107 = arith.constant 0 : index
    %380 = vector.load %arg6[%c0_105, %c6_106, %c0_107] : memref<8x8x128xf32, #tpu.memory_space<vmem>>, vector<8x1x128xf32>
    %381 = vector.shape_cast %380 : vector<8x1x128xf32> to vector<8x128xf32>
    %382 = vector.shape_cast %379 : vector<8x128xf32> to vector<8x1x128xf32>
    tpu.vector_store %arg6[%c0_105, %c6_106, %c0_107], %382 {strides = array<i32>} : memref<8x8x128xf32, #tpu.memory_space<vmem>>, vector<8x1x128xf32>,
    %383 = vector.broadcast %214 : vector<8x1xf32> to vector<8x128xf32>
    %384 = arith.mulf %205, %383 : vector<8x128xf32>
    %c7_108 = arith.constant 7 : index
    %c0_109 = arith.constant 0 : index
    %385 = vector.load %arg4[%c7_108, %c0_109] : memref<8x128xf32, #tpu.memory_space<vmem>>, vector<1x128xf32>
    %386 = vector.broadcast %385 : vector<1x128xf32> to vector<8x128xf32>
    %387 = arith.mulf %384, %386 : vector<8x128xf32>
    %c7_110 = arith.constant 7 : index
    %c0_111 = arith.constant 0 : index
    %388 = vector.load %arg5[%c7_110, %c0_111] : memref<8x128xf32, #tpu.memory_space<vmem>>, vector<1x128xf32>
    %389 = vector.broadcast %388 : vector<1x128xf32> to vector<8x128xf32>
    %390 = arith.addf %387, %389 : vector<8x128xf32>
    %cst_112 = arith.constant 5.000000e-01 : f32
    %391 = vector.broadcast %cst_112 : f32 to vector<8x128xf32>
    %392 = arith.mulf %391, %390 : vector<8x128xf32>
    %cst_113 = arith.constant 4.471500e-02 : f32
    %393 = vector.broadcast %cst_113 : f32 to vector<8x128xf32>
    %394 = arith.mulf %393, %390 : vector<8x128xf32>
    %395 = arith.mulf %394, %390 : vector<8x128xf32>
    %396 = arith.mulf %395, %390 : vector<8x128xf32>
    %397 = arith.addf %390, %396 : vector<8x128xf32>
    %cst_114 = arith.constant 0.797884583 : f32
    %398 = vector.broadcast %cst_114 : f32 to vector<8x128xf32>
    %399 = arith.mulf %398, %397 : vector<8x128xf32>
    %400 = math.tanh %399 : vector<8x128xf32>
    %cst_115 = arith.constant 1.000000e+00 : f32
    %401 = vector.broadcast %cst_115 : f32 to vector<8x128xf32>
    %402 = arith.addf %401, %400 : vector<8x128xf32>
    %403 = arith.mulf %392, %402 : vector<8x128xf32>
    %c0_116 = arith.constant 0 : index
    %c7_117 = arith.constant 7 : index
    %c0_118 = arith.constant 0 : index
    %404 = vector.load %arg6[%c0_116, %c7_117, %c0_118] : memref<8x8x128xf32, #tpu.memory_space<vmem>>, vector<8x1x128xf32>
    %405 = vector.shape_cast %404 : vector<8x1x128xf32> to vector<8x128xf32>
    %406 = vector.shape_cast %403 : vector<8x128xf32> to vector<8x1x128xf32>
    tpu.vector_store %arg6[%c0_116, %c7_117, %c0_118], %406 {strides = array<i32>} : memref<8x8x128xf32, #tpu.memory_space<vmem>>, vector<8x1x128xf32>,
    return
  }
  func.func @transform_0(%arg0: i32) -> (i32, i32, i32) {
    %c0_i32 = arith.constant 0 : i32
    %c0_i32_0 = arith.constant 0 : i32
    %c0_i32_1 = arith.constant 0 : i32
    return %arg0, %c0_i32, %c0_i32_0 : i32, i32, i32
  }
  func.func @transform_1(%arg0: i32) -> i32 {
    %c0_i32 = arith.constant 0 : i32
    %c0_i32_0 = arith.constant 0 : i32
    return %c0_i32 : i32
  }
  func.func @transform_2(%arg0: i32) -> i32 {
    %c0_i32 = arith.constant 0 : i32
    %c0_i32_0 = arith.constant 0 : i32
    return %c0_i32 : i32
  }
  func.func @transform_3(%arg0: i32) -> (i32, i32) {
    %c0_i32 = arith.constant 0 : i32
    %c0_i32_0 = arith.constant 0 : i32
    %c0_i32_1 = arith.constant 0 : i32
    return %c0_i32, %c0_i32_0 : i32, i32
  }
  func.func @transform_4(%arg0: i32) -> (i32, i32) {
    %c0_i32 = arith.constant 0 : i32
    %c0_i32_0 = arith.constant 0 : i32
    %c0_i32_1 = arith.constant 0 : i32
    return %c0_i32, %c0_i32_0 : i32, i32
  }
  func.func @transform_5(%arg0: i32) -> (i32, i32, i32) {
    %c0_i32 = arith.constant 0 : i32
    %c0_i32_0 = arith.constant 0 : i32
    %c0_i32_1 = arith.constant 0 : i32
    return %arg0, %c0_i32, %c0_i32_0 : i32, i32, i32
  }
}

</mosaic_0001>

<llo_original>
// kernel: _lambda_.1
$region0: #{_lambda_.1}
  #allocation0 [shape = 'u32[]', space=smem, size = 0x4, offset = 0x4, fixed_abs, tag = 'smem constant byte address 0x4 - core index']
  #allocation1 [shape = 'u32[144,128]{1,0:T(1,128)}', space=vmem, size = 0x12000, scoped, tag = 'internal scratch']
  %s0 = inlined_call_operand.hbm [shape: f32[16,4,128], index: 0, kind: input, shape index: {}]
  %s1 = inlined_call_operand.vmem [shape: f32[32], index: 1, kind: input, shape index: {}]
  %s2 = inlined_call_operand.vmem [shape: f32[8], index: 2, kind: input, shape index: {}]
  %s3 = inlined_call_operand.hbm [shape: f32[8,128], index: 3, kind: input, shape index: {}]
  %s4 = inlined_call_operand.vmem [shape: f32[8,128], index: 4, kind: input, shape index: {}]
  %s5 = inlined_call_operand.hbm [shape: f32[16,8,128], index: 5, kind: output, shape index: {}]
  %s6 = sld [smem:[#allocation0]]
  $region69: #{_lambda_.1} parent=0
    _
  %s8 = ssub.s32 1, %s6
  %s9 = scalar_select 0, %s8, %s6
  $region1: #{_lambda_.1} parent=0
    #allocation2 [shape = 'u8[32768]{0}', space=vmem, size = 0x8000, scoped, tag = 'input window, operand 0']
    #allocation3 [shape = 's32[2]{0}', space=sflag, size = 0x8, scoped, tag = 'scoped memory for _lambda_.1']
    #allocation4 [shape = 's32[2]{0}', space=sflag, size = 0x8, scoped, tag = 'scoped memory for _lambda_.1']
    #allocation5 [shape = 's32[2]{0}', space=sflag, size = 0x8, scoped, tag = 'scoped memory for _lambda_.1']
    #allocation6 [shape = 'u8[512]{0}', space=smem, size = 0x200, scoped, tag = 'input window, operand 1, single buffered']
    #allocation7 [shape = 'u8[512]{0}', space=smem, size = 0x200, scoped, tag = 'input window, operand 2, single buffered']
    #allocation8 [shape = 's32[1]{0}', space=sflag, size = 0x4, scoped, tag = 'scoped memory for _lambda_.1']
    #allocation9 [shape = 'u8[4096]{0}', space=vmem, size = 0x1000, scoped, tag = 'input window, operand 3, single buffered']
    #allocation10 [shape = 's32[1]{0}', space=sflag, size = 0x4, scoped, tag = 'scoped memory for _lambda_.1']
    #allocation11 [shape = 'u8[65536]{0}', space=vmem, size = 0x10000, scoped, tag = 'output window, operand 0']
    %10 = vsyncpa [#allocation3], 0
    %s11 = scalar_lea.sflag [#allocation3], 1
    %12 = vsyncpa %s11, 0
    %13 = vsyncpa [#allocation5], 0
    %14 = vsyncpa [#allocation8], 0
    %15 = vsyncpa [#allocation10], 0
    %16 = vsyncpa [#allocation4], 0
    %s17 = scalar_lea.sflag [#allocation4], 1
    %18 = vsyncpa %s17, 0
    loop: start=0, step=1, limit=4
    $region2: #{_lambda_.1} parent=1 // loop_pre_header
      _
    $region3: #{_lambda_.1} parent=1 // loop_header
      %s20 = sphi 0, %s24
      %p21 = scmp.ge.s32.totalorder %s20, 4
      %s30 = sphi 0, %s32
      %s33 = sphi 0, %s30
      %s34 = sphi 0, %s33
      %s50 = sphi 0, %s34
      %s54 = sphi 0, %s54
      %s56 = sphi 0, %s54
      %s57 = sphi 0, %s56
      %s71 = sphi 0, %s57
      %s75 = sphi 0, %s75
      %s77 = sphi 0, %s75
      %s78 = sphi 0, %s77
      %s92 = sphi 0, %s78
      %s96 = sphi 0, %s96
      %s98 = sphi 0, %s96
      %s99 = sphi 0, %s98
      %s113 = sphi 0, %s99
      %s117 = sphi 0, %s117
      %s119 = sphi 0, %s117
      %s120 = sphi 0, %s119
      %s134 = sphi 0, %s120
      %s140 = sphi 0, %s142
      %s143 = sphi 0, %s140
      %s144 = sphi 0, %s143
      %s160 = sphi 0, %s144
    $region4: #{_lambda_.1} parent=1 // loop_header_branch
      %23 = sbr.rel (%p21) target = $region8
    $region5: #{_lambda_.1} parent=1 // loop_body
      %s25 = ssub.s32 %s20, 1
      %s26 = ssub.s32 %s20, 2
      %s27 = sadd.s32 %s20, 1
      %s28 = ssub.s32 %s20, %s27
      %p29 = scmp.eq.s32.totalorder %s28, 0
      %s31 = sadd.s32 %s30, 1
      %s32 = scalar_select %p29, %s30, %s31
      %p35 = pneg %p29
      %p36 = scmp.eq.s32.totalorder %s20, 1
      %p37 = por %p35, %p36
      %p38 = scmp.ne.s32.totalorder %s30, %s33
      %p39 = scmp.eq.s32.totalorder %s20, 0
      %p40 = por %p38, %p39
      %p41 = scmp.ne.s32.totalorder %s30, %s33
      %p42 = scmp.eq.s32.totalorder %s25, 1
      %p43 = por %p41, %p42
      %p44 = scmp.ne.s32.totalorder %s33, %s34
      %p45 = scmp.eq.s32.totalorder %s25, 0
      %p46 = por %p44, %p45
      %p47 = scmp.ne.s32.totalorder %s33, %s34
      %p48 = scmp.eq.s32.totalorder %s26, 1
      %p49 = por %p47, %p48
      %p51 = scmp.ne.s32.totalorder %s34, %s50
      %p52 = scmp.eq.s32.totalorder %s26, 0
      %p53 = por %p51, %p52
      %s55 = sadd.s32 %s54, 1
      %p58 = scmp.eq.s32.totalorder %s20, 1
      %p59 = scmp.ne.s32.totalorder %s54, %s56
      %p60 = scmp.eq.s32.totalorder %s20, 0
      %p61 = por %p59, %p60
      %p62 = scmp.ne.s32.totalorder %s54, %s56
      %p63 = scmp.eq.s32.totalorder %s25, 1
      %p64 = por %p62, %p63
      %p65 = scmp.ne.s32.totalorder %s56, %s57
      %p66 = scmp.eq.s32.totalorder %s25, 0
      %p67 = por %p65, %p66
      %p68 = scmp.ne.s32.totalorder %s56, %s57
      %p69 = scmp.eq.s32.totalorder %s26, 1
      %p70 = por %p68, %p69
      %p72 = scmp.ne.s32.totalorder %s57, %s71
      %p73 = scmp.eq.s32.totalorder %s26, 0
      %p74 = por %p72, %p73
      %s76 = sadd.s32 %s75, 1
      %p79 = scmp.eq.s32.totalorder %s20, 1
      %p80 = scmp.ne.s32.totalorder %s75, %s77
      %p81 = scmp.eq.s32.totalorder %s20, 0
      %p82 = por %p80, %p81
      %p83 = scmp.ne.s32.totalorder %s75, %s77
      %p84 = scmp.eq.s32.totalorder %s25, 1
      %p85 = por %p83, %p84
      %p86 = scmp.ne.s32.totalorder %s77, %s78
      %p87 = scmp.eq.s32.totalorder %s25, 0
      %p88 = por %p86, %p87
      %p89 = scmp.ne.s32.totalorder %s77, %s78
      %p90 = scmp.eq.s32.totalorder %s26, 1
      %p91 = por %p89, %p90
      %p93 = scmp.ne.s32.totalorder %s78, %s92
      %p94 = scmp.eq.s32.totalorder %s26, 0
      %p95 = por %p93, %p94
      %s97 = sadd.s32 %s96, 1
      %p100 = scmp.eq.s32.totalorder %s20, 1
      %p101 = scmp.ne.s32.totalorder %s96, %s98
      %p102 = scmp.eq.s32.totalorder %s20, 0
      %p103 = por %p101, %p102
      %p104 = scmp.ne.s32.totalorder %s96, %s98
      %p105 = scmp.eq.s32.totalorder %s25, 1
      %p106 = por %p104, %p105
      %p107 = scmp.ne.s32.totalorder %s98, %s99
      %p108 = scmp.eq.s32.totalorder %s25, 0
      %p109 = por %p107, %p108
      %p110 = scmp.ne.s32.totalorder %s98, %s99
      %p111 = scmp.eq.s32.totalorder %s26, 1
      %p112 = por %p110, %p111
      %p114 = scmp.ne.s32.totalorder %s99, %s113
      %p115 = scmp.eq.s32.totalorder %s26, 0
      %p116 = por %p114, %p115
      %s118 = sadd.s32 %s117, 1
      %p121 = scmp.eq.s32.totalorder %s20, 1
      %p122 = scmp.ne.s32.totalorder %s117, %s119
      %p123 = scmp.eq.s32.totalorder %s20, 0
      %p124 = por %p122, %p123
      %p125 = scmp.ne.s32.totalorder %s117, %s119
      %p126 = scmp.eq.s32.totalorder %s25, 1
      %p127 = por %p125, %p126
      %p128 = scmp.ne.s32.totalorder %s119, %s120
      %p129 = scmp.eq.s32.totalorder %s25, 0
      %p130 = por %p128, %p129
      %p131 = scmp.ne.s32.totalorder %s119, %s120
      %p132 = scmp.eq.s32.totalorder %s26, 1
      %p133 = por %p131, %p132
      %p135 = scmp.ne.s32.totalorder %s120, %s134
      %p136 = scmp.eq.s32.totalorder %s26, 0
      %p137 = por %p135, %p136
      %s138 = ssub.s32 %s20, %s27
      %p139 = scmp.eq.s32.totalorder %s138, 0
      %s141 = sadd.s32 %s140, 1
      %s142 = scalar_select %p139, %s140, %s141
      %p145 = pneg %p139
      %p146 = scmp.eq.s32.totalorder %s20, 1
      %p147 = por %p145, %p146
      %p148 = scmp.ne.s32.totalorder %s140, %s143
      %p149 = scmp.eq.s32.totalorder %s20, 0
      %p150 = por %p148, %p149
      %p151 = scmp.ne.s32.totalorder %s140, %s143
      %p152 = scmp.eq.s32.totalorder %s25, 1
      %p153 = por %p151, %p152
      %p154 = scmp.ne.s32.totalorder %s143, %s144
      %p155 = scmp.eq.s32.totalorder %s25, 0
      %p156 = por %p154, %p155
      %p157 = scmp.ne.s32.totalorder %s143, %s144
      %p158 = scmp.eq.s32.totalorder %s26, 1
      %p159 = por %p157, %p158
      %p161 = scmp.ne.s32.totalorder %s144, %s160
      %p162 = scmp.eq.s32.totalorder %s26, 0
      %p163 = por %p161, %p162
      %p164 = scmp.le.s32.totalorder 1, %s20
      %p165 = scmp.lt.s32.totalorder %s20, 3
      %p166 = pnand %p164, %p165
      %p167 = pneg %p166
      // Predicated region
      $region9: #{_lambda_.1} parent=5 // pred_check
        _
      $region10: #{_lambda_.1} parent=5 // pred_check_branch
        %169 = sbr.rel (%p166) target = $region12
      $region11: #{_lambda_.1} parent=5 // pred_region
        %s170 = ssub.s32 %s20, 1
        // Predicated region
        $region13: #{_lambda_.1} parent=11 // pred_check
          %p171 = pneg %p67
        $region14: #{_lambda_.1} parent=11 // pred_check_branch
          %173 = sbr.rel (%p171) target = $region16
        $region15: #{_lambda_.1} parent=11 // pred_region
          %s175 = ssub.s32 16, 16
          %176 = vsyncadd [#allocation5], %s175
          %s178 = sshll.u32 %s1, 4
          %s179 = int_to_ptr.vmem [resolvable:$true] %s178
          %181 = dma.vmem_to_smem %s179, 16, [#allocation6], [#allocation5]
        $region16: #{_lambda_.1} parent=11 // pred_fallthru
          _
        // Predicated region
        $region17: #{_lambda_.1} parent=11 // pred_check
          %p182 = pneg %p88
        $region18: #{_lambda_.1} parent=11 // pred_check_branch
          %184 = sbr.rel (%p182) target = $region20
        $region19: #{_lambda_.1} parent=11 // pred_region
          %s186 = ssub.s32 16, 16
          %187 = vsyncadd [#allocation8], %s186
          %s189 = sshll.u32 %s2, 4
          %s190 = int_to_ptr.vmem [resolvable:$true] %s189
          %192 = dma.vmem_to_smem %s190, 16, [#allocation7], [#allocation8]
        $region20: #{_lambda_.1} parent=11 // pred_fallthru
          _
        // Predicated region
        $region21: #{_lambda_.1} parent=11 // pred_check
          %p193 = pneg %p109
        $region22: #{_lambda_.1} parent=11 // pred_check_branch
          %195 = sbr.rel (%p193) target = $region24
        $region23: #{_lambda_.1} parent=11 // pred_region
          %s197 = ssub.s32 128, 128
          %198 = vsyncadd [#allocation10], %s197
          %s200 = sshll.u32 [#allocation9], 4
          %s201 = int_to_ptr.vmem [resolvable:$true] %s200
          %203 = dma.hbm_to_vmem [thread:$0]  %s3, 128, %s201, [#allocation10]
        $region24: #{_lambda_.1} parent=11 // pred_fallthru
          _
        // Predicated region
        $region25: #{_lambda_.1} parent=11 // pred_check
          %p204 = pneg %p130
        $region26: #{_lambda_.1} parent=11 // pred_check_branch
          %206 = sbr.rel (%p204) target = $region28
        $region27: #{_lambda_.1} parent=11 // pred_region
          _
        $region28: #{_lambda_.1} parent=11 // pred_fallthru
          _
      $region12: #{_lambda_.1} parent=5 // pred_fallthru
        _
      %p207 = scmp.lt.s32.totalorder %s20, 2
      // Predicated region
      $region29: #{_lambda_.1} parent=5 // pred_check
        %p208 = pneg %p207
      $region30: #{_lambda_.1} parent=5 // pred_check_branch
        %210 = sbr.rel (%p208) target = $region32
      $region31: #{_lambda_.1} parent=5 // pred_region
        // Predicated region
        $region33: #{_lambda_.1} parent=31 // pred_check
          %p211 = pneg %p40
        $region34: #{_lambda_.1} parent=31 // pred_check_branch
          %213 = sbr.rel (%p211) target = $region36
        $region35: #{_lambda_.1} parent=31 // pred_region
          %s214 = sand.u32 %s30, 1
          %s215 = scalar_lea.sflag [#allocation3], %s214
          %s216 = sand.u32 %s30, 1
          %s217 = smul.addr %s216, 32
          %s218 = scalar_lea.vmem [#allocation2], %s217
          %s219 = smul.u32 8, %s20
          %s221 = ssub.s32 512, 512
          %222 = vsyncadd %s215, %s221
          %s223 = smul.addr %s219, 64
          %s224 = scalar_lea.hbm %s0, %s223
          %s225 = sshll.u32 %s218, 4
          %s226 = int_to_ptr.vmem [resolvable:$true] %s225
          %231 = dma.hbm_to_vmem [thread:$0]  %s224, 512, %s226, %s215, 64, 64, 4
        $region36: #{_lambda_.1} parent=31 // pred_fallthru
          _
      $region32: #{_lambda_.1} parent=5 // pred_fallthru
        _
      %p232 = scmp.le.s32.totalorder 1, %s20
      %p233 = scmp.lt.s32.totalorder %s20, 3
      %p234 = pnand %p232, %p233
      %p235 = pneg %p234
      // Predicated region
      $region37: #{_lambda_.1} parent=5 // pred_check
        _
      $region38: #{_lambda_.1} parent=5 // pred_check_branch
        %237 = sbr.rel (%p234) target = $region40
      $region39: #{_lambda_.1} parent=5 // pred_region
        %s238 = ssub.s32 %s20, 1
        %s239 = sand.u32 %s33, 1
        %s240 = scalar_lea.sflag [#allocation3], %s239
        %s241 = sand.u32 %s33, 1
        %s242 = smul.addr %s241, 32
        %s243 = scalar_lea.vmem [#allocation2], %s242
        // Predicated region
        $region41: #{_lambda_.1} parent=39 // pred_check
          %p244 = pneg %p46
        $region42: #{_lambda_.1} parent=39 // pred_check_branch
          %246 = sbr.rel (%p244) target = $region44
        $region43: #{_lambda_.1} parent=39 // pred_region
          %247 = dma.done %s240, 512
        $region44: #{_lambda_.1} parent=39 // pred_fallthru
          _
        // Predicated region
        $region45: #{_lambda_.1} parent=39 // pred_check
          %p248 = pneg %p67
        $region46: #{_lambda_.1} parent=39 // pred_check_branch
          %250 = sbr.rel (%p248) target = $region48
        $region47: #{_lambda_.1} parent=39 // pred_region
          %251 = dma.done [#allocation5], 16
        $region48: #{_lambda_.1} parent=39 // pred_fallthru
          _
        // Predicated region
        $region49: #{_lambda_.1} parent=39 // pred_check
          %p252 = pneg %p88
        $region50: #{_lambda_.1} parent=39 // pred_check_branch
          %254 = sbr.rel (%p252) target = $region52
        $region51: #{_lambda_.1} parent=39 // pred_region
          %255 = dma.done [#allocation8], 16
        $region52: #{_lambda_.1} parent=39 // pred_fallthru
          _
        // Predicated region
        $region53: #{_lambda_.1} parent=39 // pred_check
          %p256 = pneg %p109
        $region54: #{_lambda_.1} parent=39 // pred_check_branch
          %258 = sbr.rel (%p256) target = $region56
        $region55: #{_lambda_.1} parent=39 // pred_region
          %259 = dma.done [#allocation10], 128
        $region56: #{_lambda_.1} parent=39 // pred_fallthru
          _
        %260 = sfence
        %s261 = sand.u32 %s33, 1
        %s262 = scalar_lea.sflag [#allocation3], %s261
        %s263 = sand.u32 %s33, 1
        %s264 = smul.addr %s263, 32
        %s265 = scalar_lea.vmem [#allocation2], %s264
        %p266 = pneg %p46
        %p267 = pneg %p43
        %p268 = pneg %p67
        %p269 = pneg %p64
        %p270 = pneg %p88
        %p271 = pneg %p85
        %p272 = pneg %p109
        %p273 = pneg %p106
        %p274 = pneg %p130
        %p275 = pneg %p127
        %p276 = pneg %p156
        %p277 = pneg %p153
        %s278 = sand.u32 %s143, 1
        %s279 = scalar_lea.sflag [#allocation4], %s278
        %s280 = sand.u32 %s143, 1
        %s281 = smul.addr %s280, 64
        %s282 = scalar_lea.vmem [#allocation11], %s281
        %s283 = smul.u32 8, %s25
        %s284 = smul.u32 8, %s25
        %v285 = vld [vmem:[%s243] sm:$0x1]
        %v286 = vld [vmem:[%s243 + $0x4] sm:$0x1]
        %v287 = vld [vmem:[%s243 + $0x8] sm:$0x1]
        %v288 = vld [vmem:[%s243 + $0xc] sm:$0x1]
        %v289 = vld [vmem:[%s243 + $0x10] sm:$0x1]
        %v290 = vld [vmem:[%s243 + $0x14] sm:$0x1]
        %v291 = vld [vmem:[%s243 + $0x18] sm:$0x1]
        %v292 = vld [vmem:[%s243 + $0x1c] sm:$0x1]
        %v293 = vld [vmem:[%s243 + $0x1] sm:$0x1]
        %v294 = vld [vmem:[%s243 + $0x5] sm:$0x1]
        %v295 = vld [vmem:[%s243 + $0x9] sm:$0x1]
        %v296 = vld [vmem:[%s243 + $0xd] sm:$0x1]
        %v297 = vld [vmem:[%s243 + $0x11] sm:$0x1]
        %v298 = vld [vmem:[%s243 + $0x15] sm:$0x1]
        %v299 = vld [vmem:[%s243 + $0x19] sm:$0x1]
        %v300 = vld [vmem:[%s243 + $0x1d] sm:$0x1]
        %v301 = vld [vmem:[%s243 + $0x2] sm:$0x1]
        %v302 = vld [vmem:[%s243 + $0x6] sm:$0x1]
        %v303 = vld [vmem:[%s243 + $0xa] sm:$0x1]
        %v304 = vld [vmem:[%s243 + $0xe] sm:$0x1]
        %v305 = vld [vmem:[%s243 + $0x12] sm:$0x1]
        %v306 = vld [vmem:[%s243 + $0x16] sm:$0x1]
        %v307 = vld [vmem:[%s243 + $0x1a] sm:$0x1]
        %v308 = vld [vmem:[%s243 + $0x1e] sm:$0x1]
        %v309 = vld [vmem:[%s243 + $0x3] sm:$0x1]
        %v310 = vld [vmem:[%s243 + $0x7] sm:$0x1]
        %v311 = vld [vmem:[%s243 + $0xb] sm:$0x1]
        %v312 = vld [vmem:[%s243 + $0xf] sm:$0x1]
        %v313 = vld [vmem:[%s243 + $0x13] sm:$0x1]
        %v314 = vld [vmem:[%s243 + $0x17] sm:$0x1]
        %v315 = vld [vmem:[%s243 + $0x1b] sm:$0x1]
        %v316 = vld [vmem:[%s243 + $0x1f] sm:$0x1]
        %s317 = sld [smem:[#allocation6]]
        %v318 = vstv %s317
        %v319 = vmul.f32 %v285, %v318
        %v320 = vmul.f32 %v286, %v318
        %v321 = vmul.f32 %v287, %v318
        %v322 = vmul.f32 %v288, %v318
        %v323 = vmul.f32 %v289, %v318
        %v324 = vmul.f32 %v290, %v318
        %v325 = vmul.f32 %v291, %v318
        %v326 = vmul.f32 %v292, %v318
        %s327 = sld [smem:[#allocation6 + $0x1]]
        %v328 = vstv %s327
        %v329 = vmul.f32 %v293, %v328
        %v330 = vmul.f32 %v294, %v328
        %v331 = vmul.f32 %v295, %v328
        %v332 = vmul.f32 %v296, %v328
        %v333 = vmul.f32 %v297, %v328
        %v334 = vmul.f32 %v298, %v328
        %v335 = vmul.f32 %v299, %v328
        %v336 = vmul.f32 %v300, %v328
        %v337 = vadd.f32 %v319, %v329
        %v338 = vadd.f32 %v320, %v330
        %v339 = vadd.f32 %v321, %v331
        %v340 = vadd.f32 %v322, %v332
        %v341 = vadd.f32 %v323, %v333
        %v342 = vadd.f32 %v324, %v334
        %v343 = vadd.f32 %v325, %v335
        %v344 = vadd.f32 %v326, %v336
        %s345 = sld [smem:[#allocation6 + $0x2]]
        %v346 = vstv %s345
        %v347 = vmul.f32 %v301, %v346
        %v348 = vmul.f32 %v302, %v346
        %v349 = vmul.f32 %v303, %v346
        %v350 = vmul.f32 %v304, %v346
        %v351 = vmul.f32 %v305, %v346
        %v352 = vmul.f32 %v306, %v346
        %v353 = vmul.f32 %v307, %v346
        %v354 = vmul.f32 %v308, %v346
        %v355 = vadd.f32 %v337, %v347
        %v356 = vadd.f32 %v338, %v348
        %v357 = vadd.f32 %v339, %v349
        %v358 = vadd.f32 %v340, %v350
        %v359 = vadd.f32 %v341, %v351
        %v360 = vadd.f32 %v342, %v352
        %v361 = vadd.f32 %v343, %v353
        %v362 = vadd.f32 %v344, %v354
        %s363 = sld [smem:[#allocation6 + $0x3]]
        %v364 = vstv %s363
        %v365 = vmul.f32 %v309, %v364
        %v366 = vmul.f32 %v310, %v364
        %v367 = vmul.f32 %v311, %v364
        %v368 = vmul.f32 %v312, %v364
        %v369 = vmul.f32 %v313, %v364
        %v370 = vmul.f32 %v314, %v364
        %v371 = vmul.f32 %v315, %v364
        %v372 = vmul.f32 %v316, %v364
        %v373 = vadd.f32 %v355, %v365
        %v374 = vadd.f32 %v356, %v366
        %v375 = vadd.f32 %v357, %v367
        %v376 = vadd.f32 %v358, %v368
        %v377 = vadd.f32 %v359, %v369
        %v378 = vadd.f32 %v360, %v370
        %v379 = vadd.f32 %v361, %v371
        %v380 = vadd.f32 %v362, %v372
        %s381 = sld [smem:[#allocation7]]
        %v382 = vstv %s381
        %v383 = vadd.f32 %v373, %v382
        %v384 = vadd.f32 %v374, %v382
        %v385 = vadd.f32 %v375, %v382
        %v386 = vadd.f32 %v376, %v382
        %v387 = vadd.f32 %v377, %v382
        %v388 = vadd.f32 %v378, %v382
        %v389 = vadd.f32 %v379, %v382
        %v390 = vadd.f32 %v380, %v382
        %s391 = sld [smem:[#allocation6 + $0x4]]
        %v392 = vstv %s391
        %v393 = vmul.f32 %v285, %v392
        %v394 = vmul.f32 %v286, %v392
        %v395 = vmul.f32 %v287, %v392
        %v396 = vmul.f32 %v288, %v392
        %v397 = vmul.f32 %v289, %v392
        %v398 = vmul.f32 %v290, %v392
        %v399 = vmul.f32 %v291, %v392
        %v400 = vmul.f32 %v292, %v392
        %s401 = sld [smem:[#allocation6 + $0x5]]
        %v402 = vstv %s401
        %v403 = vmul.f32 %v293, %v402
        %v404 = vmul.f32 %v294, %v402
        %v405 = vmul.f32 %v295, %v402
        %v406 = vmul.f32 %v296, %v402
        %v407 = vmul.f32 %v297, %v402
        %v408 = vmul.f32 %v298, %v402
        %v409 = vmul.f32 %v299, %v402
        %v410 = vmul.f32 %v300, %v402
        %v411 = vadd.f32 %v393, %v403
        %v412 = vadd.f32 %v394, %v404
        %v413 = vadd.f32 %v395, %v405
        %v414 = vadd.f32 %v396, %v406
        %v415 = vadd.f32 %v397, %v407
        %v416 = vadd.f32 %v398, %v408
        %v417 = vadd.f32 %v399, %v409
        %v418 = vadd.f32 %v400, %v410
        %s419 = sld [smem:[#allocation6 + $0x6]]
        %v420 = vstv %s419
        %v421 = vmul.f32 %v301, %v420
        %v422 = vmul.f32 %v302, %v420
        %v423 = vmul.f32 %v303, %v420
        %v424 = vmul.f32 %v304, %v420
        %v425 = vmul.f32 %v305, %v420
        %v426 = vmul.f32 %v306, %v420
        %v427 = vmul.f32 %v307, %v420
        %v428 = vmul.f32 %v308, %v420
        %v429 = vadd.f32 %v411, %v421
        %v430 = vadd.f32 %v412, %v422
        %v431 = vadd.f32 %v413, %v423
        %v432 = vadd.f32 %v414, %v424
        %v433 = vadd.f32 %v415, %v425
        %v434 = vadd.f32 %v416, %v426
        %v435 = vadd.f32 %v417, %v427
        %v436 = vadd.f32 %v418, %v428
        %s437 = sld [smem:[#allocation6 + $0x7]]
        %v438 = vstv %s437
        %v439 = vmul.f32 %v309, %v438
        %v440 = vmul.f32 %v310, %v438
        %v441 = vmul.f32 %v311, %v438
        %v442 = vmul.f32 %v312, %v438
        %v443 = vmul.f32 %v313, %v438
        %v444 = vmul.f32 %v314, %v438
        %v445 = vmul.f32 %v315, %v438
        %v446 = vmul.f32 %v316, %v438
        %v447 = vadd.f32 %v429, %v439
        %v448 = vadd.f32 %v430, %v440
        %v449 = vadd.f32 %v431, %v441
        %v450 = vadd.f32 %v432, %v442
        %v451 = vadd.f32 %v433, %v443
        %v452 = vadd.f32 %v434, %v444
        %v453 = vadd.f32 %v435, %v445
        %v454 = vadd.f32 %v436, %v446
        %s455 = sld [smem:[#allocation7 + $0x1]]
        %v456 = vstv %s455
        %v457 = vadd.f32 %v447, %v456
        %v458 = vadd.f32 %v448, %v456
        %v459 = vadd.f32 %v449, %v456
        %v460 = vadd.f32 %v450, %v456
        %v461 = vadd.f32 %v451, %v456
        %v462 = vadd.f32 %v452, %v456
        %v463 = vadd.f32 %v453, %v456
        %v464 = vadd.f32 %v454, %v456
        %v465 = vadd.f32 %v383, %v457
        %v466 = vadd.f32 %v384, %v458
        %v467 = vadd.f32 %v385, %v459
        %v468 = vadd.f32 %v386, %v460
        %v469 = vadd.f32 %v387, %v461
        %v470 = vadd.f32 %v388, %v462
        %v471 = vadd.f32 %v389, %v463
        %v472 = vadd.f32 %v390, %v464
        %s473 = sld [smem:[#allocation6 + $0x8]]
        %v474 = vstv %s473
        %v475 = vmul.f32 %v285, %v474
        %v476 = vmul.f32 %v286, %v474
        %v477 = vmul.f32 %v287, %v474
        %v478 = vmul.f32 %v288, %v474
        %v479 = vmul.f32 %v289, %v474
        %v480 = vmul.f32 %v290, %v474
        %v481 = vmul.f32 %v291, %v474
        %v482 = vmul.f32 %v292, %v474
        %s483 = sld [smem:[#allocation6 + $0x9]]
        %v484 = vstv %s483
        %v485 = vmul.f32 %v293, %v484
        %v486 = vmul.f32 %v294, %v484
        %v487 = vmul.f32 %v295, %v484
        %v488 = vmul.f32 %v296, %v484
        %v489 = vmul.f32 %v297, %v484
        %v490 = vmul.f32 %v298, %v484
        %v491 = vmul.f32 %v299, %v484
        %v492 = vmul.f32 %v300, %v484
        %v493 = vadd.f32 %v475, %v485
        %v494 = vadd.f32 %v476, %v486
        %v495 = vadd.f32 %v477, %v487
        %v496 = vadd.f32 %v478, %v488
        %v497 = vadd.f32 %v479, %v489
        %v498 = vadd.f32 %v480, %v490
        %v499 = vadd.f32 %v481, %v491
        %v500 = vadd.f32 %v482, %v492
        %s501 = sld [smem:[#allocation6 + $0xa]]
        %v502 = vstv %s501
        %v503 = vmul.f32 %v301, %v502
        %v504 = vmul.f32 %v302, %v502
        %v505 = vmul.f32 %v303, %v502
        %v506 = vmul.f32 %v304, %v502
        %v507 = vmul.f32 %v305, %v502
        %v508 = vmul.f32 %v306, %v502
        %v509 = vmul.f32 %v307, %v502
        %v510 = vmul.f32 %v308, %v502
        %v511 = vadd.f32 %v493, %v503
        %v512 = vadd.f32 %v494, %v504
        %v513 = vadd.f32 %v495, %v505
        %v514 = vadd.f32 %v496, %v506
        %v515 = vadd.f32 %v497, %v507
        %v516 = vadd.f32 %v498, %v508
        %v517 = vadd.f32 %v499, %v509
        %v518 = vadd.f32 %v500, %v510
        %s519 = sld [smem:[#allocation6 + $0xb]]
        %v520 = vstv %s519
        %v521 = vmul.f32 %v309, %v520
        %v522 = vmul.f32 %v310, %v520
        %v523 = vmul.f32 %v311, %v520
        %v524 = vmul.f32 %v312, %v520
        %v525 = vmul.f32 %v313, %v520
        %v526 = vmul.f32 %v314, %v520
        %v527 = vmul.f32 %v315, %v520
        %v528 = vmul.f32 %v316, %v520
        %v529 = vadd.f32 %v511, %v521
        %v530 = vadd.f32 %v512, %v522
        %v531 = vadd.f32 %v513, %v523
        %v532 = vadd.f32 %v514, %v524
        %v533 = vadd.f32 %v515, %v525
        %v534 = vadd.f32 %v516, %v526
        %v535 = vadd.f32 %v517, %v527
        %v536 = vadd.f32 %v518, %v528
        %s537 = sld [smem:[#allocation7 + $0x2]]
        %v538 = vstv %s537
        %v539 = vadd.f32 %v529, %v538
        %v540 = vadd.f32 %v530, %v538
        %v541 = vadd.f32 %v531, %v538
        %v542 = vadd.f32 %v532, %v538
        %v543 = vadd.f32 %v533, %v538
        %v544 = vadd.f32 %v534, %v538
        %v545 = vadd.f32 %v535, %v538
        %v546 = vadd.f32 %v536, %v538
        %v547 = vadd.f32 %v465, %v539
        %v548 = vadd.f32 %v466, %v540
        %v549 = vadd.f32 %v467, %v541
        %v550 = vadd.f32 %v468, %v542
        %v551 = vadd.f32 %v469, %v543
        %v552 = vadd.f32 %v470, %v544
        %v553 = vadd.f32 %v471, %v545
        %v554 = vadd.f32 %v472, %v546
        %s555 = sld [smem:[#allocation6 + $0xc]]
        %v556 = vstv %s555
        %v557 = vmul.f32 %v285, %v556
        %v558 = vmul.f32 %v286, %v556
        %v559 = vmul.f32 %v287, %v556
        %v560 = vmul.f32 %v288, %v556
        %v561 = vmul.f32 %v289, %v556
        %v562 = vmul.f32 %v290, %v556
        %v563 = vmul.f32 %v291, %v556
        %v564 = vmul.f32 %v292, %v556
        %s565 = sld [smem:[#allocation6 + $0xd]]
        %v566 = vstv %s565
        %v567 = vmul.f32 %v293, %v566
        %v568 = vmul.f32 %v294, %v566
        %v569 = vmul.f32 %v295, %v566
        %v570 = vmul.f32 %v296, %v566
        %v571 = vmul.f32 %v297, %v566
        %v572 = vmul.f32 %v298, %v566
        %v573 = vmul.f32 %v299, %v566
        %v574 = vmul.f32 %v300, %v566
        %v575 = vadd.f32 %v557, %v567
        %v576 = vadd.f32 %v558, %v568
        %v577 = vadd.f32 %v559, %v569
        %v578 = vadd.f32 %v560, %v570
        %v579 = vadd.f32 %v561, %v571
        %v580 = vadd.f32 %v562, %v572
        %v581 = vadd.f32 %v563, %v573
        %v582 = vadd.f32 %v564, %v574
        %s583 = sld [smem:[#allocation6 + $0xe]]
        %v584 = vstv %s583
        %v585 = vmul.f32 %v301, %v584
        %v586 = vmul.f32 %v302, %v584
        %v587 = vmul.f32 %v303, %v584
        %v588 = vmul.f32 %v304, %v584
        %v589 = vmul.f32 %v305, %v584
        %v590 = vmul.f32 %v306, %v584
        %v591 = vmul.f32 %v307, %v584
        %v592 = vmul.f32 %v308, %v584
        %v593 = vadd.f32 %v575, %v585
        %v594 = vadd.f32 %v576, %v586
        %v595 = vadd.f32 %v577, %v587
        %v596 = vadd.f32 %v578, %v588
        %v597 = vadd.f32 %v579, %v589
        %v598 = vadd.f32 %v580, %v590
        %v599 = vadd.f32 %v581, %v591
        %v600 = vadd.f32 %v582, %v592
        %s601 = sld [smem:[#allocation6 + $0xf]]
        %v602 = vstv %s601
        %v603 = vmul.f32 %v309, %v602
        %v604 = vmul.f32 %v310, %v602
        %v605 = vmul.f32 %v311, %v602
        %v606 = vmul.f32 %v312, %v602
        %v607 = vmul.f32 %v313, %v602
        %v608 = vmul.f32 %v314, %v602
        %v609 = vmul.f32 %v315, %v602
        %v610 = vmul.f32 %v316, %v602
        %v611 = vadd.f32 %v593, %v603
        %v612 = vadd.f32 %v594, %v604
        %v613 = vadd.f32 %v595, %v605
        %v614 = vadd.f32 %v596, %v606
        %v615 = vadd.f32 %v597, %v607
        %v616 = vadd.f32 %v598, %v608
        %v617 = vadd.f32 %v599, %v609
        %v618 = vadd.f32 %v600, %v610
        %s619 = sld [smem:[#allocation7 + $0x3]]
        %v620 = vstv %s619
        %v621 = vadd.f32 %v611, %v620
        %v622 = vadd.f32 %v612, %v620
        %v623 = vadd.f32 %v613, %v620
        %v624 = vadd.f32 %v614, %v620
        %v625 = vadd.f32 %v615, %v620
        %v626 = vadd.f32 %v616, %v620
        %v627 = vadd.f32 %v617, %v620
        %v628 = vadd.f32 %v618, %v620
        %v629 = vadd.f32 %v547, %v621
        %v630 = vadd.f32 %v548, %v622
        %v631 = vadd.f32 %v549, %v623
        %v632 = vadd.f32 %v550, %v624
        %v633 = vadd.f32 %v551, %v625
        %v634 = vadd.f32 %v552, %v626
        %v635 = vadd.f32 %v553, %v627
        %v636 = vadd.f32 %v554, %v628
        %s637 = sld [smem:[#allocation6 + $0x10]]
        %v638 = vstv %s637
        %v639 = vmul.f32 %v285, %v638
        %v640 = vmul.f32 %v286, %v638
        %v641 = vmul.f32 %v287, %v638
        %v642 = vmul.f32 %v288, %v638
        %v643 = vmul.f32 %v289, %v638
        %v644 = vmul.f32 %v290, %v638
        %v645 = vmul.f32 %v291, %v638
        %v646 = vmul.f32 %v292, %v638
        %s647 = sld [smem:[#allocation6 + $0x11]]
        %v648 = vstv %s647
        %v649 = vmul.f32 %v293, %v648
        %v650 = vmul.f32 %v294, %v648
        %v651 = vmul.f32 %v295, %v648
        %v652 = vmul.f32 %v296, %v648
        %v653 = vmul.f32 %v297, %v648
        %v654 = vmul.f32 %v298, %v648
        %v655 = vmul.f32 %v299, %v648
        %v656 = vmul.f32 %v300, %v648
        %v657 = vadd.f32 %v639, %v649
        %v658 = vadd.f32 %v640, %v650
        %v659 = vadd.f32 %v641, %v651
        %v660 = vadd.f32 %v642, %v652
        %v661 = vadd.f32 %v643, %v653
        %v662 = vadd.f32 %v644, %v654
        %v663 = vadd.f32 %v645, %v655
        %v664 = vadd.f32 %v646, %v656
        %s665 = sld [smem:[#allocation6 + $0x12]]
        %v666 = vstv %s665
        %v667 = vmul.f32 %v301, %v666
        %v668 = vmul.f32 %v302, %v666
        %v669 = vmul.f32 %v303, %v666
        %v670 = vmul.f32 %v304, %v666
        %v671 = vmul.f32 %v305, %v666
        %v672 = vmul.f32 %v306, %v666
        %v673 = vmul.f32 %v307, %v666
        %v674 = vmul.f32 %v308, %v666
        %v675 = vadd.f32 %v657, %v667
        %v676 = vadd.f32 %v658, %v668
        %v677 = vadd.f32 %v659, %v669
        %v678 = vadd.f32 %v660, %v670
        %v679 = vadd.f32 %v661, %v671
        %v680 = vadd.f32 %v662, %v672
        %v681 = vadd.f32 %v663, %v673
        %v682 = vadd.f32 %v664, %v674
        %s683 = sld [smem:[#allocation6 + $0x13]]
        %v684 = vstv %s683
        %v685 = vmul.f32 %v309, %v684
        %v686 = vmul.f32 %v310, %v684
        %v687 = vmul.f32 %v311, %v684
        %v688 = vmul.f32 %v312, %v684
        %v689 = vmul.f32 %v313, %v684
        %v690 = vmul.f32 %v314, %v684
        %v691 = vmul.f32 %v315, %v684
        %v692 = vmul.f32 %v316, %v684
        %v693 = vadd.f32 %v675, %v685
        %v694 = vadd.f32 %v676, %v686
        %v695 = vadd.f32 %v677, %v687
        %v696 = vadd.f32 %v678, %v688
        %v697 = vadd.f32 %v679, %v689
        %v698 = vadd.f32 %v680, %v690
        %v699 = vadd.f32 %v681, %v691
        %v700 = vadd.f32 %v682, %v692
        %s701 = sld [smem:[#allocation7 + $0x4]]
        %v702 = vstv %s701
        %v703 = vadd.f32 %v693, %v702
        %v704 = vadd.f32 %v694, %v702
        %v705 = vadd.f32 %v695, %v702
        %v706 = vadd.f32 %v696, %v702
        %v707 = vadd.f32 %v697, %v702
        %v708 = vadd.f32 %v698, %v702
        %v709 = vadd.f32 %v699, %v702
        %v710 = vadd.f32 %v700, %v702
        %v711 = vadd.f32 %v629, %v703
        %v712 = vadd.f32 %v630, %v704
        %v713 = vadd.f32 %v631, %v705
        %v714 = vadd.f32 %v632, %v706
        %v715 = vadd.f32 %v633, %v707
        %v716 = vadd.f32 %v634, %v708
        %v717 = vadd.f32 %v635, %v709
        %v718 = vadd.f32 %v636, %v710
        %s719 = sld [smem:[#allocation6 + $0x14]]
        %v720 = vstv %s719
        %v721 = vmul.f32 %v285, %v720
        %v722 = vmul.f32 %v286, %v720
        %v723 = vmul.f32 %v287, %v720
        %v724 = vmul.f32 %v288, %v720
        %v725 = vmul.f32 %v289, %v720
        %v726 = vmul.f32 %v290, %v720
        %v727 = vmul.f32 %v291, %v720
        %v728 = vmul.f32 %v292, %v720
        %s729 = sld [smem:[#allocation6 + $0x15]]
        %v730 = vstv %s729
        %v731 = vmul.f32 %v293, %v730
        %v732 = vmul.f32 %v294, %v730
        %v733 = vmul.f32 %v295, %v730
        %v734 = vmul.f32 %v296, %v730
        %v735 = vmul.f32 %v297, %v730
        %v736 = vmul.f32 %v298, %v730
        %v737 = vmul.f32 %v299, %v730
        %v738 = vmul.f32 %v300, %v730
        %v739 = vadd.f32 %v721, %v731
        %v740 = vadd.f32 %v722, %v732
        %v741 = vadd.f32 %v723, %v733
        %v742 = vadd.f32 %v724, %v734
        %v743 = vadd.f32 %v725, %v735
        %v744 = vadd.f32 %v726, %v736
        %v745 = vadd.f32 %v727, %v737
        %v746 = vadd.f32 %v728, %v738
        %s747 = sld [smem:[#allocation6 + $0x16]]
        %v748 = vstv %s747
        %v749 = vmul.f32 %v301, %v748
        %v750 = vmul.f32 %v302, %v748
        %v751 = vmul.f32 %v303, %v748
        %v752 = vmul.f32 %v304, %v748
        %v753 = vmul.f32 %v305, %v748
        %v754 = vmul.f32 %v306, %v748
        %v755 = vmul.f32 %v307, %v748
        %v756 = vmul.f32 %v308, %v748
        %v757 = vadd.f32 %v739, %v749
        %v758 = vadd.f32 %v740, %v750
        %v759 = vadd.f32 %v741, %v751
        %v760 = vadd.f32 %v742, %v752
        %v761 = vadd.f32 %v743, %v753
        %v762 = vadd.f32 %v744, %v754
        %v763 = vadd.f32 %v745, %v755
        %v764 = vadd.f32 %v746, %v756
        %s765 = sld [smem:[#allocation6 + $0x17]]
        %v766 = vstv %s765
        %v767 = vmul.f32 %v309, %v766
        %v768 = vmul.f32 %v310, %v766
        %v769 = vmul.f32 %v311, %v766
        %v770 = vmul.f32 %v312, %v766
        %v771 = vmul.f32 %v313, %v766
        %v772 = vmul.f32 %v314, %v766
        %v773 = vmul.f32 %v315, %v766
        %v774 = vmul.f32 %v316, %v766
        %v775 = vadd.f32 %v757, %v767
        %v776 = vadd.f32 %v758, %v768
        %v777 = vadd.f32 %v759, %v769
        %v778 = vadd.f32 %v760, %v770
        %v779 = vadd.f32 %v761, %v771
        %v780 = vadd.f32 %v762, %v772
        %v781 = vadd.f32 %v763, %v773
        %v782 = vadd.f32 %v764, %v774
        %s783 = sld [smem:[#allocation7 + $0x5]]
        %v784 = vstv %s783
        %v785 = vadd.f32 %v775, %v784
        %v786 = vadd.f32 %v776, %v784
        %v787 = vadd.f32 %v777, %v784
        %v788 = vadd.f32 %v778, %v784
        %v789 = vadd.f32 %v779, %v784
        %v790 = vadd.f32 %v780, %v784
        %v791 = vadd.f32 %v781, %v784
        %v792 = vadd.f32 %v782, %v784
        %v793 = vadd.f32 %v711, %v785
        %v794 = vadd.f32 %v712, %v786
        %v795 = vadd.f32 %v713, %v787
        %v796 = vadd.f32 %v714, %v788
        %v797 = vadd.f32 %v715, %v789
        %v798 = vadd.f32 %v716, %v790
        %v799 = vadd.f32 %v717, %v791
        %v800 = vadd.f32 %v718, %v792
        %s801 = sld [smem:[#allocation6 + $0x18]]
        %v802 = vstv %s801
        %v803 = vmul.f32 %v285, %v802
        %v804 = vmul.f32 %v286, %v802
        %v805 = vmul.f32 %v287, %v802
        %v806 = vmul.f32 %v288, %v802
        %v807 = vmul.f32 %v289, %v802
        %v808 = vmul.f32 %v290, %v802
        %v809 = vmul.f32 %v291, %v802
        %v810 = vmul.f32 %v292, %v802
        %s811 = sld [smem:[#allocation6 + $0x19]]
        %v812 = vstv %s811
        %v813 = vmul.f32 %v293, %v812
        %v814 = vmul.f32 %v294, %v812
        %v815 = vmul.f32 %v295, %v812
        %v816 = vmul.f32 %v296, %v812
        %v817 = vmul.f32 %v297, %v812
        %v818 = vmul.f32 %v298, %v812
        %v819 = vmul.f32 %v299, %v812
        %v820 = vmul.f32 %v300, %v812
        %v821 = vadd.f32 %v803, %v813
        %v822 = vadd.f32 %v804, %v814
        %v823 = vadd.f32 %v805, %v815
        %v824 = vadd.f32 %v806, %v816
        %v825 = vadd.f32 %v807, %v817
        %v826 = vadd.f32 %v808, %v818
        %v827 = vadd.f32 %v809, %v819
        %v828 = vadd.f32 %v810, %v820
        %s829 = sld [smem:[#allocation6 + $0x1a]]
        %v830 = vstv %s829
        %v831 = vmul.f32 %v301, %v830
        %v832 = vmul.f32 %v302, %v830
        %v833 = vmul.f32 %v303, %v830
        %v834 = vmul.f32 %v304, %v830
        %v835 = vmul.f32 %v305, %v830
        %v836 = vmul.f32 %v306, %v830
        %v837 = vmul.f32 %v307, %v830
        %v838 = vmul.f32 %v308, %v830
        %v839 = vadd.f32 %v821, %v831
        %v840 = vadd.f32 %v822, %v832
        %v841 = vadd.f32 %v823, %v833
        %v842 = vadd.f32 %v824, %v834
        %v843 = vadd.f32 %v825, %v835
        %v844 = vadd.f32 %v826, %v836
        %v845 = vadd.f32 %v827, %v837
        %v846 = vadd.f32 %v828, %v838
        %s847 = sld [smem:[#allocation6 + $0x1b]]
        %v848 = vstv %s847
        %v849 = vmul.f32 %v309, %v848
        %v850 = vmul.f32 %v310, %v848
        %v851 = vmul.f32 %v311, %v848
        %v852 = vmul.f32 %v312, %v848
        %v853 = vmul.f32 %v313, %v848
        %v854 = vmul.f32 %v314, %v848
        %v855 = vmul.f32 %v315, %v848
        %v856 = vmul.f32 %v316, %v848
        %v857 = vadd.f32 %v839, %v849
        %v858 = vadd.f32 %v840, %v850
        %v859 = vadd.f32 %v841, %v851
        %v860 = vadd.f32 %v842, %v852
        %v861 = vadd.f32 %v843, %v853
        %v862 = vadd.f32 %v844, %v854
        %v863 = vadd.f32 %v845, %v855
        %v864 = vadd.f32 %v846, %v856
        %s865 = sld [smem:[#allocation7 + $0x6]]
        %v866 = vstv %s865
        %v867 = vadd.f32 %v857, %v866
        %v868 = vadd.f32 %v858, %v866
        %v869 = vadd.f32 %v859, %v866
        %v870 = vadd.f32 %v860, %v866
        %v871 = vadd.f32 %v861, %v866
        %v872 = vadd.f32 %v862, %v866
        %v873 = vadd.f32 %v863, %v866
        %v874 = vadd.f32 %v864, %v866
        %v875 = vadd.f32 %v793, %v867
        %v876 = vadd.f32 %v794, %v868
        %v877 = vadd.f32 %v795, %v869
        %v878 = vadd.f32 %v796, %v870
        %v879 = vadd.f32 %v797, %v871
        %v880 = vadd.f32 %v798, %v872
        %v881 = vadd.f32 %v799, %v873
        %v882 = vadd.f32 %v800, %v874
        %s883 = sld [smem:[#allocation6 + $0x1c]]
        %v884 = vstv %s883
        %v885 = vmul.f32 %v285, %v884
        %v886 = vmul.f32 %v286, %v884
        %v887 = vmul.f32 %v287, %v884
        %v888 = vmul.f32 %v288, %v884
        %v889 = vmul.f32 %v289, %v884
        %v890 = vmul.f32 %v290, %v884
        %v891 = vmul.f32 %v291, %v884
        %v892 = vmul.f32 %v292, %v884
        %s893 = sld [smem:[#allocation6 + $0x1d]]
        %v894 = vstv %s893
        %v895 = vmul.f32 %v293, %v894
        %v896 = vmul.f32 %v294, %v894
        %v897 = vmul.f32 %v295, %v894
        %v898 = vmul.f32 %v296, %v894
        %v899 = vmul.f32 %v297, %v894
        %v900 = vmul.f32 %v298, %v894
        %v901 = vmul.f32 %v299, %v894
        %v902 = vmul.f32 %v300, %v894
        %v903 = vadd.f32 %v885, %v895
        %v904 = vadd.f32 %v886, %v896
        %v905 = vadd.f32 %v887, %v897
        %v906 = vadd.f32 %v888, %v898
        %v907 = vadd.f32 %v889, %v899
        %v908 = vadd.f32 %v890, %v900
        %v909 = vadd.f32 %v891, %v901
        %v910 = vadd.f32 %v892, %v902
        %s911 = sld [smem:[#allocation6 + $0x1e]]
        %v912 = vstv %s911
        %v913 = vmul.f32 %v301, %v912
        %v914 = vmul.f32 %v302, %v912
        %v915 = vmul.f32 %v303, %v912
        %v916 = vmul.f32 %v304, %v912
        %v917 = vmul.f32 %v305, %v912
        %v918 = vmul.f32 %v306, %v912
        %v919 = vmul.f32 %v307, %v912
        %v920 = vmul.f32 %v308, %v912
        %v921 = vadd.f32 %v903, %v913
        %v922 = vadd.f32 %v904, %v914
        %v923 = vadd.f32 %v905, %v915
        %v924 = vadd.f32 %v906, %v916
        %v925 = vadd.f32 %v907, %v917
        %v926 = vadd.f32 %v908, %v918
        %v927 = vadd.f32 %v909, %v919
        %v928 = vadd.f32 %v910, %v920
        %s929 = sld [smem:[#allocation6 + $0x1f]]
        %v930 = vstv %s929
        %v931 = vmul.f32 %v309, %v930
        %v932 = vmul.f32 %v310, %v930
        %v933 = vmul.f32 %v311, %v930
        %v934 = vmul.f32 %v312, %v930
        %v935 = vmul.f32 %v313, %v930
        %v936 = vmul.f32 %v314, %v930
        %v937 = vmul.f32 %v315, %v930
        %v938 = vmul.f32 %v316, %v930
        %v939 = vadd.f32 %v921, %v931
        %v940 = vadd.f32 %v922, %v932
        %v941 = vadd.f32 %v923, %v933
        %v942 = vadd.f32 %v924, %v934
        %v943 = vadd.f32 %v925, %v935
        %v944 = vadd.f32 %v926, %v936
        %v945 = vadd.f32 %v927, %v937
        %v946 = vadd.f32 %v928, %v938
        %s947 = sld [smem:[#allocation7 + $0x7]]
        %v948 = vstv %s947
        %v949 = vadd.f32 %v939, %v948
        %v950 = vadd.f32 %v940, %v948
        %v951 = vadd.f32 %v941, %v948
        %v952 = vadd.f32 %v942, %v948
        %v953 = vadd.f32 %v943, %v948
        %v954 = vadd.f32 %v944, %v948
        %v955 = vadd.f32 %v945, %v948
        %v956 = vadd.f32 %v946, %v948
        %v957 = vadd.f32 %v875, %v949
        %v958 = vadd.f32 %v876, %v950
        %v959 = vadd.f32 %v877, %v951
        %v960 = vadd.f32 %v878, %v952
        %v961 = vadd.f32 %v879, %v953
        %v962 = vadd.f32 %v880, %v954
        %v963 = vadd.f32 %v881, %v955
        %v964 = vadd.f32 %v882, %v956
        %v973 = vrot.slane %v958, 7
        %vm974 = vcmask 1041409
        %v975 = vsel %vm974, %v973, %v957
        %v976 = vrot.slane %v959, 6
        %vm977 = vcmask 1042434
        %v978 = vsel %vm977, %v976, %v975
        %v979 = vrot.slane %v960, 5
        %vm980 = vcmask 1043459
        %v981 = vsel %vm980, %v979, %v978
        %v982 = vrot.slane %v961, 4
        %vm983 = vcmask 1044484
        %v984 = vsel %vm983, %v982, %v981
        %v985 = vrot.slane %v962, 3
        %vm986 = vcmask 1045509
        %v987 = vsel %vm986, %v985, %v984
        %v988 = vrot.slane %v963, 2
        %vm989 = vcmask 1046534
        %v990 = vsel %vm989, %v988, %v987
        %v991 = vrot.slane %v964, 1
        %vm992 = vcmask 1047559
        %v993 = vsel %vm992, %v991, %v990
        %995 = vadd.xlane.f32.xlu0 %v993
        %v996 = vpop.xlane.xlu0 %995
        %v997 = vmul.f32 %v996, 0.0009765625
        %v999 = vrot.slane %v997, 1
        %v1000 = vrot.slane %v997, 2
        %v1001 = vrot.slane %v997, 3
        %v1002 = vrot.slane %v997, 4
        %v1003 = vrot.slane %v997, 5
        %v1004 = vrot.slane %v997, 6
        %v1005 = vrot.slane %v997, 7
        %v1014 = vsub.f32 %v383, %v997
        %v1015 = vsub.f32 %v384, %v999
        %v1016 = vsub.f32 %v385, %v1000
        %v1017 = vsub.f32 %v386, %v1001
        %v1018 = vsub.f32 %v387, %v1002
        %v1019 = vsub.f32 %v388, %v1003
        %v1020 = vsub.f32 %v389, %v1004
        %v1021 = vsub.f32 %v390, %v1005
        %v1022 = vmul.f32 %v1014, %v1014
        %v1023 = vmul.f32 %v1015, %v1015
        %v1024 = vmul.f32 %v1016, %v1016
        %v1025 = vmul.f32 %v1017, %v1017
        %v1026 = vmul.f32 %v1018, %v1018
        %v1027 = vmul.f32 %v1019, %v1019
        %v1028 = vmul.f32 %v1020, %v1020
        %v1029 = vmul.f32 %v1021, %v1021
        %v1038 = vrot.slane %v1023, 7
        %v1039 = vsel %vm974, %v1038, %v1022
        %v1040 = vrot.slane %v1024, 6
        %v1041 = vsel %vm977, %v1040, %v1039
        %v1042 = vrot.slane %v1025, 5
        %v1043 = vsel %vm980, %v1042, %v1041
        %v1044 = vrot.slane %v1026, 4
        %v1045 = vsel %vm983, %v1044, %v1043
        %v1046 = vrot.slane %v1027, 3
        %v1047 = vsel %vm986, %v1046, %v1045
        %v1048 = vrot.slane %v1028, 2
        %v1049 = vsel %vm989, %v1048, %v1047
        %v1050 = vrot.slane %v1029, 1
        %v1051 = vsel %vm992, %v1050, %v1049
        %1053 = vadd.xlane.f32.xlu0 %v1051
        %v1054 = vpop.xlane.xlu0 %1053
        %v1055 = vsub.f32 %v457, %v997
        %v1056 = vsub.f32 %v458, %v999
        %v1057 = vsub.f32 %v459, %v1000
        %v1058 = vsub.f32 %v460, %v1001
        %v1059 = vsub.f32 %v461, %v1002
        %v1060 = vsub.f32 %v462, %v1003
        %v1061 = vsub.f32 %v463, %v1004
        %v1062 = vsub.f32 %v464, %v1005
        %v1063 = vmul.f32 %v1055, %v1055
        %v1064 = vmul.f32 %v1056, %v1056
        %v1065 = vmul.f32 %v1057, %v1057
        %v1066 = vmul.f32 %v1058, %v1058
        %v1067 = vmul.f32 %v1059, %v1059
        %v1068 = vmul.f32 %v1060, %v1060
        %v1069 = vmul.f32 %v1061, %v1061
        %v1070 = vmul.f32 %v1062, %v1062
        %v1079 = vrot.slane %v1064, 7
        %v1080 = vsel %vm974, %v1079, %v1063
        %v1081 = vrot.slane %v1065, 6
        %v1082 = vsel %vm977, %v1081, %v1080
        %v1083 = vrot.slane %v1066, 5
        %v1084 = vsel %vm980, %v1083, %v1082
        %v1085 = vrot.slane %v1067, 4
        %v1086 = vsel %vm983, %v1085, %v1084
        %v1087 = vrot.slane %v1068, 3
        %v1088 = vsel %vm986, %v1087, %v1086
        %v1089 = vrot.slane %v1069, 2
        %v1090 = vsel %vm989, %v1089, %v1088
        %v1091 = vrot.slane %v1070, 1
        %v1092 = vsel %vm992, %v1091, %v1090
        %1094 = vadd.xlane.f32.xlu0 %v1092
        %v1095 = vpop.xlane.xlu0 %1094
        %v1096 = vadd.f32 %v1054, %v1095
        %v1097 = vsub.f32 %v539, %v997
        %v1098 = vsub.f32 %v540, %v999
        %v1099 = vsub.f32 %v541, %v1000
        %v1100 = vsub.f32 %v542, %v1001
        %v1101 = vsub.f32 %v543, %v1002
        %v1102 = vsub.f32 %v544, %v1003
        %v1103 = vsub.f32 %v545, %v1004
        %v1104 = vsub.f32 %v546, %v1005
        %v1105 = vmul.f32 %v1097, %v1097
        %v1106 = vmul.f32 %v1098, %v1098
        %v1107 = vmul.f32 %v1099, %v1099
        %v1108 = vmul.f32 %v1100, %v1100
        %v1109 = vmul.f32 %v1101, %v1101
        %v1110 = vmul.f32 %v1102, %v1102
        %v1111 = vmul.f32 %v1103, %v1103
        %v1112 = vmul.f32 %v1104, %v1104
        %v1121 = vrot.slane %v1106, 7
        %v1122 = vsel %vm974, %v1121, %v1105
        %v1123 = vrot.slane %v1107, 6
        %v1124 = vsel %vm977, %v1123, %v1122
        %v1125 = vrot.slane %v1108, 5
        %v1126 = vsel %vm980, %v1125, %v1124
        %v1127 = vrot.slane %v1109, 4
        %v1128 = vsel %vm983, %v1127, %v1126
        %v1129 = vrot.slane %v1110, 3
        %v1130 = vsel %vm986, %v1129, %v1128
        %v1131 = vrot.slane %v1111, 2
        %v1132 = vsel %vm989, %v1131, %v1130
        %v1133 = vrot.slane %v1112, 1
        %v1134 = vsel %vm992, %v1133, %v1132
        %1136 = vadd.xlane.f32.xlu0 %v1134
        %v1137 = vpop.xlane.xlu0 %1136
        %v1138 = vadd.f32 %v1096, %v1137
        %v1139 = vsub.f32 %v621, %v997
        %v1140 = vsub.f32 %v622, %v999
        %v1141 = vsub.f32 %v623, %v1000
        %v1142 = vsub.f32 %v624, %v1001
        %v1143 = vsub.f32 %v625, %v1002
        %v1144 = vsub.f32 %v626, %v1003
        %v1145 = vsub.f32 %v627, %v1004
        %v1146 = vsub.f32 %v628, %v1005
        %v1147 = vmul.f32 %v1139, %v1139
        %v1148 = vmul.f32 %v1140, %v1140
        %v1149 = vmul.f32 %v1141, %v1141
        %v1150 = vmul.f32 %v1142, %v1142
        %v1151 = vmul.f32 %v1143, %v1143
        %v1152 = vmul.f32 %v1144, %v1144
        %v1153 = vmul.f32 %v1145, %v1145
        %v1154 = vmul.f32 %v1146, %v1146
        %v1163 = vrot.slane %v1148, 7
        %v1164 = vsel %vm974, %v1163, %v1147
        %v1165 = vrot.slane %v1149, 6
        %v1166 = vsel %vm977, %v1165, %v1164
        %v1167 = vrot.slane %v1150, 5
        %v1168 = vsel %vm980, %v1167, %v1166
        %v1169 = vrot.slane %v1151, 4
        %v1170 = vsel %vm983, %v1169, %v1168
        %v1171 = vrot.slane %v1152, 3
        %v1172 = vsel %vm986, %v1171, %v1170
        %v1173 = vrot.slane %v1153, 2
        %v1174 = vsel %vm989, %v1173, %v1172
        %v1175 = vrot.slane %v1154, 1
        %v1176 = vsel %vm992, %v1175, %v1174
        %1178 = vadd.xlane.f32.xlu0 %v1176
        %v1179 = vpop.xlane.xlu0 %1178
        %v1180 = vadd.f32 %v1138, %v1179
        %v1181 = vsub.f32 %v703, %v997
        %v1182 = vsub.f32 %v704, %v999
        %v1183 = vsub.f32 %v705, %v1000
        %v1184 = vsub.f32 %v706, %v1001
        %v1185 = vsub.f32 %v707, %v1002
        %v1186 = vsub.f32 %v708, %v1003
        %v1187 = vsub.f32 %v709, %v1004
        %v1188 = vsub.f32 %v710, %v1005
        %v1189 = vmul.f32 %v1181, %v1181
        %v1190 = vmul.f32 %v1182, %v1182
        %v1191 = vmul.f32 %v1183, %v1183
        %v1192 = vmul.f32 %v1184, %v1184
        %v1193 = vmul.f32 %v1185, %v1185
        %v1194 = vmul.f32 %v1186, %v1186
        %v1195 = vmul.f32 %v1187, %v1187
        %v1196 = vmul.f32 %v1188, %v1188
        %v1205 = vrot.slane %v1190, 7
        %v1206 = vsel %vm974, %v1205, %v1189
        %v1207 = vrot.slane %v1191, 6
        %v1208 = vsel %vm977, %v1207, %v1206
        %v1209 = vrot.slane %v1192, 5
        %v1210 = vsel %vm980, %v1209, %v1208
        %v1211 = vrot.slane %v1193, 4
        %v1212 = vsel %vm983, %v1211, %v1210
        %v1213 = vrot.slane %v1194, 3
        %v1214 = vsel %vm986, %v1213, %v1212
        %v1215 = vrot.slane %v1195, 2
        %v1216 = vsel %vm989, %v1215, %v1214
        %v1217 = vrot.slane %v1196, 1
        %v1218 = vsel %vm992, %v1217, %v1216
        %1220 = vadd.xlane.f32.xlu0 %v1218
        %v1221 = vpop.xlane.xlu0 %1220
        %v1222 = vadd.f32 %v1180, %v1221
        %v1223 = vsub.f32 %v785, %v997
        %v1224 = vsub.f32 %v786, %v999
        %v1225 = vsub.f32 %v787, %v1000
        %v1226 = vsub.f32 %v788, %v1001
        %v1227 = vsub.f32 %v789, %v1002
        %v1228 = vsub.f32 %v790, %v1003
        %v1229 = vsub.f32 %v791, %v1004
        %v1230 = vsub.f32 %v792, %v1005
        %v1231 = vmul.f32 %v1223, %v1223
        %v1232 = vmul.f32 %v1224, %v1224
        %v1233 = vmul.f32 %v1225, %v1225
        %v1234 = vmul.f32 %v1226, %v1226
        %v1235 = vmul.f32 %v1227, %v1227
        %v1236 = vmul.f32 %v1228, %v1228
        %v1237 = vmul.f32 %v1229, %v1229
        %v1238 = vmul.f32 %v1230, %v1230
        %v1247 = vrot.slane %v1232, 7
        %v1248 = vsel %vm974, %v1247, %v1231
        %v1249 = vrot.slane %v1233, 6
        %v1250 = vsel %vm977, %v1249, %v1248
        %v1251 = vrot.slane %v1234, 5
        %v1252 = vsel %vm980, %v1251, %v1250
        %v1253 = vrot.slane %v1235, 4
        %v1254 = vsel %vm983, %v1253, %v1252
        %v1255 = vrot.slane %v1236, 3
        %v1256 = vsel %vm986, %v1255, %v1254
        %v1257 = vrot.slane %v1237, 2
        %v1258 = vsel %vm989, %v1257, %v1256
        %v1259 = vrot.slane %v1238, 1
        %v1260 = vsel %vm992, %v1259, %v1258
        %1262 = vadd.xlane.f32.xlu0 %v1260
        %v1263 = vpop.xlane.xlu0 %1262
        %v1264 = vadd.f32 %v1222, %v1263
        %v1265 = vsub.f32 %v867, %v997
        %v1266 = vsub.f32 %v868, %v999
        %v1267 = vsub.f32 %v869, %v1000
        %v1268 = vsub.f32 %v870, %v1001
        %v1269 = vsub.f32 %v871, %v1002
        %v1270 = vsub.f32 %v872, %v1003
        %v1271 = vsub.f32 %v873, %v1004
        %v1272 = vsub.f32 %v874, %v1005
        %v1273 = vmul.f32 %v1265, %v1265
        %v1274 = vmul.f32 %v1266, %v1266
        %v1275 = vmul.f32 %v1267, %v1267
        %v1276 = vmul.f32 %v1268, %v1268
        %v1277 = vmul.f32 %v1269, %v1269
        %v1278 = vmul.f32 %v1270, %v1270
        %v1279 = vmul.f32 %v1271, %v1271
        %v1280 = vmul.f32 %v1272, %v1272
        %v1289 = vrot.slane %v1274, 7
        %v1290 = vsel %vm974, %v1289, %v1273
        %v1291 = vrot.slane %v1275, 6
        %v1292 = vsel %vm977, %v1291, %v1290
        %v1293 = vrot.slane %v1276, 5
        %v1294 = vsel %vm980, %v1293, %v1292
        %v1295 = vrot.slane %v1277, 4
        %v1296 = vsel %vm983, %v1295, %v1294
        %v1297 = vrot.slane %v1278, 3
        %v1298 = vsel %vm986, %v1297, %v1296
        %v1299 = vrot.slane %v1279, 2
        %v1300 = vsel %vm989, %v1299, %v1298
        %v1301 = vrot.slane %v1280, 1
        %v1302 = vsel %vm992, %v1301, %v1300
        %1304 = vadd.xlane.f32.xlu0 %v1302
        %v1305 = vpop.xlane.xlu0 %1304
        %v1306 = vadd.f32 %v1264, %v1305
        %v1307 = vsub.f32 %v949, %v997
        %v1308 = vsub.f32 %v950, %v999
        %v1309 = vsub.f32 %v951, %v1000
        %v1310 = vsub.f32 %v952, %v1001
        %v1311 = vsub.f32 %v953, %v1002
        %v1312 = vsub.f32 %v954, %v1003
        %v1313 = vsub.f32 %v955, %v1004
        %v1314 = vsub.f32 %v956, %v1005
        %v1315 = vmul.f32 %v1307, %v1307
        %v1316 = vmul.f32 %v1308, %v1308
        %v1317 = vmul.f32 %v1309, %v1309
        %v1318 = vmul.f32 %v1310, %v1310
        %v1319 = vmul.f32 %v1311, %v1311
        %v1320 = vmul.f32 %v1312, %v1312
        %v1321 = vmul.f32 %v1313, %v1313
        %v1322 = vmul.f32 %v1314, %v1314
        %v1331 = vrot.slane %v1316, 7
        %v1332 = vsel %vm974, %v1331, %v1315
        %v1333 = vrot.slane %v1317, 6
        %v1334 = vsel %vm977, %v1333, %v1332
        %v1335 = vrot.slane %v1318, 5
        %v1336 = vsel %vm980, %v1335, %v1334
        %v1337 = vrot.slane %v1319, 4
        %v1338 = vsel %vm983, %v1337, %v1336
        %v1339 = vrot.slane %v1320, 3
        %v1340 = vsel %vm986, %v1339, %v1338
        %v1341 = vrot.slane %v1321, 2
        %v1342 = vsel %vm989, %v1341, %v1340
        %v1343 = vrot.slane %v1322, 1
        %v1344 = vsel %vm992, %v1343, %v1342
        %1346 = vadd.xlane.f32.xlu0 %v1344
        %v1347 = vpop.xlane.xlu0 %1346
        %v1348 = vadd.f32 %v1306, %v1347
        %v1349 = vmul.f32 %v1348, 0.0009765625
        %v1350 = vadd.f32 %v1349, 1e-05
        %v1351 = vrsqrt.pop %v1350
        %v1353 = vrot.slane %v1351, 1
        %v1354 = vrot.slane %v1351, 2
        %v1355 = vrot.slane %v1351, 3
        %v1356 = vrot.slane %v1351, 4
        %v1357 = vrot.slane %v1351, 5
        %v1358 = vrot.slane %v1351, 6
        %v1359 = vrot.slane %v1351, 7
        %v1368 = vmul.f32 %v1014, %v1351
        %v1369 = vmul.f32 %v1015, %v1353
        %v1370 = vmul.f32 %v1016, %v1354
        %v1371 = vmul.f32 %v1017, %v1355
        %v1372 = vmul.f32 %v1018, %v1356
        %v1373 = vmul.f32 %v1019, %v1357
        %v1374 = vmul.f32 %v1020, %v1358
        %v1375 = vmul.f32 %v1021, %v1359
        %v1376 = vld [vmem:[#allocation9] sm:$0x1]
        %v1377 = vlaneseq
        %v1378 = vshrl.u32 %v1377, 7
        %v1379 = vsub.s32 0, %v1378
        %v1380 = vrot.slane %v1376, %v1379
        %v1381 = vmul.f32 %v1368, %v1380
        %v1382 = vmul.f32 %v1369, %v1380
        %v1383 = vmul.f32 %v1370, %v1380
        %v1384 = vmul.f32 %v1371, %v1380
        %v1385 = vmul.f32 %v1372, %v1380
        %v1386 = vmul.f32 %v1373, %v1380
        %v1387 = vmul.f32 %v1374, %v1380
        %v1388 = vmul.f32 %v1375, %v1380
        %v1389 = vld [vmem:[%s4] sm:$0x1]
        %v1390 = vlaneseq
        %v1391 = vshrl.u32 %v1390, 7
        %v1392 = vsub.s32 0, %v1391
        %v1393 = vrot.slane %v1389, %v1392
        %v1394 = vadd.f32 %v1381, %v1393
        %v1395 = vadd.f32 %v1382, %v1393
        %v1396 = vadd.f32 %v1383, %v1393
        %v1397 = vadd.f32 %v1384, %v1393
        %v1398 = vadd.f32 %v1385, %v1393
        %v1399 = vadd.f32 %v1386, %v1393
        %v1400 = vadd.f32 %v1387, %v1393
        %v1401 = vadd.f32 %v1388, %v1393
        %v1402 = vmul.f32 %v1394, 0.5
        %v1403 = vmul.f32 %v1395, 0.5
        %v1404 = vmul.f32 %v1396, 0.5
        %v1405 = vmul.f32 %v1397, 0.5
        %v1406 = vmul.f32 %v1398, 0.5
        %v1407 = vmul.f32 %v1399, 0.5
        %v1408 = vmul.f32 %v1400, 0.5
        %v1409 = vmul.f32 %v1401, 0.5
        %v1410 = vmul.f32 %v1394, 0.044715
        %v1411 = vmul.f32 %v1395, 0.044715
        %v1412 = vmul.f32 %v1396, 0.044715
        %v1413 = vmul.f32 %v1397, 0.044715
        %v1414 = vmul.f32 %v1398, 0.044715
        %v1415 = vmul.f32 %v1399, 0.044715
        %v1416 = vmul.f32 %v1400, 0.044715
        %v1417 = vmul.f32 %v1401, 0.044715
        %v1418 = vmul.f32 %v1410, %v1394
        %v1419 = vmul.f32 %v1411, %v1395
        %v1420 = vmul.f32 %v1412, %v1396
        %v1421 = vmul.f32 %v1413, %v1397
        %v1422 = vmul.f32 %v1414, %v1398
        %v1423 = vmul.f32 %v1415, %v1399
        %v1424 = vmul.f32 %v1416, %v1400
        %v1425 = vmul.f32 %v1417, %v1401
        %v1426 = vmul.f32 %v1418, %v1394
        %v1427 = vmul.f32 %v1419, %v1395
        %v1428 = vmul.f32 %v1420, %v1396
        %v1429 = vmul.f32 %v1421, %v1397
        %v1430 = vmul.f32 %v1422, %v1398
        %v1431 = vmul.f32 %v1423, %v1399
        %v1432 = vmul.f32 %v1424, %v1400
        %v1433 = vmul.f32 %v1425, %v1401
        %v1434 = vadd.f32 %v1394, %v1426
        %v1435 = vadd.f32 %v1395, %v1427
        %v1436 = vadd.f32 %v1396, %v1428
        %v1437 = vadd.f32 %v1397, %v1429
        %v1438 = vadd.f32 %v1398, %v1430
        %v1439 = vadd.f32 %v1399, %v1431
        %v1440 = vadd.f32 %v1400, %v1432
        %v1441 = vadd.f32 %v1401, %v1433
        %v1442 = vmul.f32 %v1434, 0.7978846
        %v1443 = vmul.f32 %v1435, 0.7978846
        %v1444 = vmul.f32 %v1436, 0.7978846
        %v1445 = vmul.f32 %v1437, 0.7978846
        %v1446 = vmul.f32 %v1438, 0.7978846
        %v1447 = vmul.f32 %v1439, 0.7978846
        %v1448 = vmul.f32 %v1440, 0.7978846
        %v1449 = vmul.f32 %v1441, 0.7978846
        %v1450 = vtanh.pop %v1442
        %v1451 = vtanh.pop %v1443
        %v1452 = vtanh.pop %v1444
        %v1453 = vtanh.pop %v1445
        %v1454 = vtanh.pop %v1446
        %v1455 = vtanh.pop %v1447
        %v1456 = vtanh.pop %v1448
        %v1457 = vtanh.pop %v1449
        %v1458 = vadd.f32 %v1450, 1.0
        %v1459 = vadd.f32 %v1451, 1.0
        %v1460 = vadd.f32 %v1452, 1.0
        %v1461 = vadd.f32 %v1453, 1.0
        %v1462 = vadd.f32 %v1454, 1.0
        %v1463 = vadd.f32 %v1455, 1.0
        %v1464 = vadd.f32 %v1456, 1.0
        %v1465 = vadd.f32 %v1457, 1.0
        %v1466 = vmul.f32 %v1402, %v1458
        %v1467 = vmul.f32 %v1403, %v1459
        %v1468 = vmul.f32 %v1404, %v1460
        %v1469 = vmul.f32 %v1405, %v1461
        %v1470 = vmul.f32 %v1406, %v1462
        %v1471 = vmul.f32 %v1407, %v1463
        %v1472 = vmul.f32 %v1408, %v1464
        %v1473 = vmul.f32 %v1409, %v1465
        %1474 = vst [vmem:[%s282] sm:$0x1] %v1466
        %1475 = vst [vmem:[%s282 + $0x8] sm:$0x1] %v1467
        %1476 = vst [vmem:[%s282 + $0x10] sm:$0x1] %v1468
        %1477 = vst [vmem:[%s282 + $0x18] sm:$0x1] %v1469
        %1478 = vst [vmem:[%s282 + $0x20] sm:$0x1] %v1470
        %1479 = vst [vmem:[%s282 + $0x28] sm:$0x1] %v1471
        %1480 = vst [vmem:[%s282 + $0x30] sm:$0x1] %v1472
        %1481 = vst [vmem:[%s282 + $0x38] sm:$0x1] %v1473
        %v1482 = vmul.f32 %v1055, %v1351
        %v1483 = vmul.f32 %v1056, %v1353
        %v1484 = vmul.f32 %v1057, %v1354
        %v1485 = vmul.f32 %v1058, %v1355
        %v1486 = vmul.f32 %v1059, %v1356
        %v1487 = vmul.f32 %v1060, %v1357
        %v1488 = vmul.f32 %v1061, %v1358
        %v1489 = vmul.f32 %v1062, %v1359
        %v1490 = vld [vmem:[#allocation9 + $0x1] sm:$0x1]
        %v1491 = vlaneseq
        %v1492 = vshrl.u32 %v1491, 7
        %v1493 = vsub.s32 0, %v1492
        %v1494 = vrot.slane %v1490, %v1493
        %v1495 = vmul.f32 %v1482, %v1494
        %v1496 = vmul.f32 %v1483, %v1494
        %v1497 = vmul.f32 %v1484, %v1494
        %v1498 = vmul.f32 %v1485, %v1494
        %v1499 = vmul.f32 %v1486, %v1494
        %v1500 = vmul.f32 %v1487, %v1494
        %v1501 = vmul.f32 %v1488, %v1494
        %v1502 = vmul.f32 %v1489, %v1494
        %v1503 = vld [vmem:[%s4 + $0x1] sm:$0x1]
        %v1504 = vlaneseq
        %v1505 = vshrl.u32 %v1504, 7
        %v1506 = vsub.s32 0, %v1505
        %v1507 = vrot.slane %v1503, %v1506
        %v1508 = vadd.f32 %v1495, %v1507
        %v1509 = vadd.f32 %v1496, %v1507
        %v1510 = vadd.f32 %v1497, %v1507
        %v1511 = vadd.f32 %v1498, %v1507
        %v1512 = vadd.f32 %v1499, %v1507
        %v1513 = vadd.f32 %v1500, %v1507
        %v1514 = vadd.f32 %v1501, %v1507
        %v1515 = vadd.f32 %v1502, %v1507
        %v1516 = vmul.f32 %v1508, 0.5
        %v1517 = vmul.f32 %v1509, 0.5
        %v1518 = vmul.f32 %v1510, 0.5
        %v1519 = vmul.f32 %v1511, 0.5
        %v1520 = vmul.f32 %v1512, 0.5
        %v1521 = vmul.f32 %v1513, 0.5
        %v1522 = vmul.f32 %v1514, 0.5
        %v1523 = vmul.f32 %v1515, 0.5
        %v1524 = vmul.f32 %v1508, 0.044715
        %v1525 = vmul.f32 %v1509, 0.044715
        %v1526 = vmul.f32 %v1510, 0.044715
        %v1527 = vmul.f32 %v1511, 0.044715
        %v1528 = vmul.f32 %v1512, 0.044715
        %v1529 = vmul.f32 %v1513, 0.044715
        %v1530 = vmul.f32 %v1514, 0.044715
        %v1531 = vmul.f32 %v1515, 0.044715
        %v1532 = vmul.f32 %v1524, %v1508
        %v1533 = vmul.f32 %v1525, %v1509
        %v1534 = vmul.f32 %v1526, %v1510
        %v1535 = vmul.f32 %v1527, %v1511
        %v1536 = vmul.f32 %v1528, %v1512
        %v1537 = vmul.f32 %v1529, %v1513
        %v1538 = vmul.f32 %v1530, %v1514
        %v1539 = vmul.f32 %v1531, %v1515
        %v1540 = vmul.f32 %v1532, %v1508
        %v1541 = vmul.f32 %v1533, %v1509
        %v1542 = vmul.f32 %v1534, %v1510
        %v1543 = vmul.f32 %v1535, %v1511
        %v1544 = vmul.f32 %v1536, %v1512
        %v1545 = vmul.f32 %v1537, %v1513
        %v1546 = vmul.f32 %v1538, %v1514
        %v1547 = vmul.f32 %v1539, %v1515
        %v1548 = vadd.f32 %v1508, %v1540
        %v1549 = vadd.f32 %v1509, %v1541
        %v1550 = vadd.f32 %v1510, %v1542
        %v1551 = vadd.f32 %v1511, %v1543
        %v1552 = vadd.f32 %v1512, %v1544
        %v1553 = vadd.f32 %v1513, %v1545
        %v1554 = vadd.f32 %v1514, %v1546
        %v1555 = vadd.f32 %v1515, %v1547
        %v1556 = vmul.f32 %v1548, 0.7978846
        %v1557 = vmul.f32 %v1549, 0.7978846
        %v1558 = vmul.f32 %v1550, 0.7978846
        %v1559 = vmul.f32 %v1551, 0.7978846
        %v1560 = vmul.f32 %v1552, 0.7978846
        %v1561 = vmul.f32 %v1553, 0.7978846
        %v1562 = vmul.f32 %v1554, 0.7978846
        %v1563 = vmul.f32 %v1555, 0.7978846
        %v1564 = vtanh.pop %v1556
        %v1565 = vtanh.pop %v1557
        %v1566 = vtanh.pop %v1558
        %v1567 = vtanh.pop %v1559
        %v1568 = vtanh.pop %v1560
        %v1569 = vtanh.pop %v1561
        %v1570 = vtanh.pop %v1562
        %v1571 = vtanh.pop %v1563
        %v1572 = vadd.f32 %v1564, 1.0
        %v1573 = vadd.f32 %v1565, 1.0
        %v1574 = vadd.f32 %v1566, 1.0
        %v1575 = vadd.f32 %v1567, 1.0
        %v1576 = vadd.f32 %v1568, 1.0
        %v1577 = vadd.f32 %v1569, 1.0
        %v1578 = vadd.f32 %v1570, 1.0
        %v1579 = vadd.f32 %v1571, 1.0
        %v1580 = vmul.f32 %v1516, %v1572
        %v1581 = vmul.f32 %v1517, %v1573
        %v1582 = vmul.f32 %v1518, %v1574
        %v1583 = vmul.f32 %v1519, %v1575
        %v1584 = vmul.f32 %v1520, %v1576
        %v1585 = vmul.f32 %v1521, %v1577
        %v1586 = vmul.f32 %v1522, %v1578
        %v1587 = vmul.f32 %v1523, %v1579
        %1588 = vst [vmem:[%s282 + $0x1] sm:$0x1] %v1580
        %1589 = vst [vmem:[%s282 + $0x9] sm:$0x1] %v1581
        %1590 = vst [vmem:[%s282 + $0x11] sm:$0x1] %v1582
        %1591 = vst [vmem:[%s282 + $0x19] sm:$0x1] %v1583
        %1592 = vst [vmem:[%s282 + $0x21] sm:$0x1] %v1584
        %1593 = vst [vmem:[%s282 + $0x29] sm:$0x1] %v1585
        %1594 = vst [vmem:[%s282 + $0x31] sm:$0x1] %v1586
        %1595 = vst [vmem:[%s282 + $0x39] sm:$0x1] %v1587
        %v1596 = vmul.f32 %v1097, %v1351
        %v1597 = vmul.f32 %v1098, %v1353
        %v1598 = vmul.f32 %v1099, %v1354
        %v1599 = vmul.f32 %v1100, %v1355
        %v1600 = vmul.f32 %v1101, %v1356
        %v1601 = vmul.f32 %v1102, %v1357
        %v1602 = vmul.f32 %v1103, %v1358
        %v1603 = vmul.f32 %v1104, %v1359
        %v1604 = vld [vmem:[#allocation9 + $0x2] sm:$0x1]
        %v1605 = vlaneseq
        %v1606 = vshrl.u32 %v1605, 7
        %v1607 = vsub.s32 0, %v1606
        %v1608 = vrot.slane %v1604, %v1607
        %v1609 = vmul.f32 %v1596, %v1608
        %v1610 = vmul.f32 %v1597, %v1608
        %v1611 = vmul.f32 %v1598, %v1608
        %v1612 = vmul.f32 %v1599, %v1608
        %v1613 = vmul.f32 %v1600, %v1608
        %v1614 = vmul.f32 %v1601, %v1608
        %v1615 = vmul.f32 %v1602, %v1608
        %v1616 = vmul.f32 %v1603, %v1608
        %v1617 = vld [vmem:[%s4 + $0x2] sm:$0x1]
        %v1618 = vlaneseq
        %v1619 = vshrl.u32 %v1618, 7
        %v1620 = vsub.s32 0, %v1619
        %v1621 = vrot.slane %v1617, %v1620
        %v1622 = vadd.f32 %v1609, %v1621
        %v1623 = vadd.f32 %v1610, %v1621
        %v1624 = vadd.f32 %v1611, %v1621
        %v1625 = vadd.f32 %v1612, %v1621
        %v1626 = vadd.f32 %v1613, %v1621
        %v1627 = vadd.f32 %v1614, %v1621
        %v1628 = vadd.f32 %v1615, %v1621
        %v1629 = vadd.f32 %v1616, %v1621
        %v1630 = vmul.f32 %v1622, 0.5
        %v1631 = vmul.f32 %v1623, 0.5
        %v1632 = vmul.f32 %v1624, 0.5
        %v1633 = vmul.f32 %v1625, 0.5
        %v1634 = vmul.f32 %v1626, 0.5
        %v1635 = vmul.f32 %v1627, 0.5
        %v1636 = vmul.f32 %v1628, 0.5
        %v1637 = vmul.f32 %v1629, 0.5
        %v1638 = vmul.f32 %v1622, 0.044715
        %v1639 = vmul.f32 %v1623, 0.044715
        %v1640 = vmul.f32 %v1624, 0.044715
        %v1641 = vmul.f32 %v1625, 0.044715
        %v1642 = vmul.f32 %v1626, 0.044715
        %v1643 = vmul.f32 %v1627, 0.044715
        %v1644 = vmul.f32 %v1628, 0.044715
        %v1645 = vmul.f32 %v1629, 0.044715
        %v1646 = vmul.f32 %v1638, %v1622
        %v1647 = vmul.f32 %v1639, %v1623
        %v1648 = vmul.f32 %v1640, %v1624
        %v1649 = vmul.f32 %v1641, %v1625
        %v1650 = vmul.f32 %v1642, %v1626
        %v1651 = vmul.f32 %v1643, %v1627
        %v1652 = vmul.f32 %v1644, %v1628
        %v1653 = vmul.f32 %v1645, %v1629
        %v1654 = vmul.f32 %v1646, %v1622
        %v1655 = vmul.f32 %v1647, %v1623
        %v1656 = vmul.f32 %v1648, %v1624
        %v1657 = vmul.f32 %v1649, %v1625
        %v1658 = vmul.f32 %v1650, %v1626
        %v1659 = vmul.f32 %v1651, %v1627
        %v1660 = vmul.f32 %v1652, %v1628
        %v1661 = vmul.f32 %v1653, %v1629
        %v1662 = vadd.f32 %v1622, %v1654
        %v1663 = vadd.f32 %v1623, %v1655
        %v1664 = vadd.f32 %v1624, %v1656
        %v1665 = vadd.f32 %v1625, %v1657
        %v1666 = vadd.f32 %v1626, %v1658
        %v1667 = vadd.f32 %v1627, %v1659
        %v1668 = vadd.f32 %v1628, %v1660
        %v1669 = vadd.f32 %v1629, %v1661
        %v1670 = vmul.f32 %v1662, 0.7978846
        %v1671 = vmul.f32 %v1663, 0.7978846
        %v1672 = vmul.f32 %v1664, 0.7978846
        %v1673 = vmul.f32 %v1665, 0.7978846
        %v1674 = vmul.f32 %v1666, 0.7978846
        %v1675 = vmul.f32 %v1667, 0.7978846
        %v1676 = vmul.f32 %v1668, 0.7978846
        %v1677 = vmul.f32 %v1669, 0.7978846
        %v1678 = vtanh.pop %v1670
        %v1679 = vtanh.pop %v1671
        %v1680 = vtanh.pop %v1672
        %v1681 = vtanh.pop %v1673
        %v1682 = vtanh.pop %v1674
        %v1683 = vtanh.pop %v1675
        %v1684 = vtanh.pop %v1676
        %v1685 = vtanh.pop %v1677
        %v1686 = vadd.f32 %v1678, 1.0
        %v1687 = vadd.f32 %v1679, 1.0
        %v1688 = vadd.f32 %v1680, 1.0
        %v1689 = vadd.f32 %v1681, 1.0
        %v1690 = vadd.f32 %v1682, 1.0
        %v1691 = vadd.f32 %v1683, 1.0
        %v1692 = vadd.f32 %v1684, 1.0
        %v1693 = vadd.f32 %v1685, 1.0
        %v1694 = vmul.f32 %v1630, %v1686
        %v1695 = vmul.f32 %v1631, %v1687
        %v1696 = vmul.f32 %v1632, %v1688
        %v1697 = vmul.f32 %v1633, %v1689
        %v1698 = vmul.f32 %v1634, %v1690
        %v1699 = vmul.f32 %v1635, %v1691
        %v1700 = vmul.f32 %v1636, %v1692
        %v1701 = vmul.f32 %v1637, %v1693
        %1702 = vst [vmem:[%s282 + $0x2] sm:$0x1] %v1694
        %1703 = vst [vmem:[%s282 + $0xa] sm:$0x1] %v1695
        %1704 = vst [vmem:[%s282 + $0x12] sm:$0x1] %v1696
        %1705 = vst [vmem:[%s282 + $0x1a] sm:$0x1] %v1697
        %1706 = vst [vmem:[%s282 + $0x22] sm:$0x1] %v1698
        %1707 = vst [vmem:[%s282 + $0x2a] sm:$0x1] %v1699
        %1708 = vst [vmem:[%s282 + $0x32] sm:$0x1] %v1700
        %1709 = vst [vmem:[%s282 + $0x3a] sm:$0x1] %v1701
        %v1710 = vmul.f32 %v1139, %v1351
        %v1711 = vmul.f32 %v1140, %v1353
        %v1712 = vmul.f32 %v1141, %v1354
        %v1713 = vmul.f32 %v1142, %v1355
        %v1714 = vmul.f32 %v1143, %v1356
        %v1715 = vmul.f32 %v1144, %v1357
        %v1716 = vmul.f32 %v1145, %v1358
        %v1717 = vmul.f32 %v1146, %v1359
        %v1718 = vld [vmem:[#allocation9 + $0x3] sm:$0x1]
        %v1719 = vlaneseq
        %v1720 = vshrl.u32 %v1719, 7
        %v1721 = vsub.s32 0, %v1720
        %v1722 = vrot.slane %v1718, %v1721
        %v1723 = vmul.f32 %v1710, %v1722
        %v1724 = vmul.f32 %v1711, %v1722
        %v1725 = vmul.f32 %v1712, %v1722
        %v1726 = vmul.f32 %v1713, %v1722
        %v1727 = vmul.f32 %v1714, %v1722
        %v1728 = vmul.f32 %v1715, %v1722
        %v1729 = vmul.f32 %v1716, %v1722
        %v1730 = vmul.f32 %v1717, %v1722
        %v1731 = vld [vmem:[%s4 + $0x3] sm:$0x1]
        %v1732 = vlaneseq
        %v1733 = vshrl.u32 %v1732, 7
        %v1734 = vsub.s32 0, %v1733
        %v1735 = vrot.slane %v1731, %v1734
        %v1736 = vadd.f32 %v1723, %v1735
        %v1737 = vadd.f32 %v1724, %v1735
        %v1738 = vadd.f32 %v1725, %v1735
        %v1739 = vadd.f32 %v1726, %v1735
        %v1740 = vadd.f32 %v1727, %v1735
        %v1741 = vadd.f32 %v1728, %v1735
        %v1742 = vadd.f32 %v1729, %v1735
        %v1743 = vadd.f32 %v1730, %v1735
        %v1744 = vmul.f32 %v1736, 0.5
        %v1745 = vmul.f32 %v1737, 0.5
        %v1746 = vmul.f32 %v1738, 0.5
        %v1747 = vmul.f32 %v1739, 0.5
        %v1748 = vmul.f32 %v1740, 0.5
        %v1749 = vmul.f32 %v1741, 0.5
        %v1750 = vmul.f32 %v1742, 0.5
        %v1751 = vmul.f32 %v1743, 0.5
        %v1752 = vmul.f32 %v1736, 0.044715
        %v1753 = vmul.f32 %v1737, 0.044715
        %v1754 = vmul.f32 %v1738, 0.044715
        %v1755 = vmul.f32 %v1739, 0.044715
        %v1756 = vmul.f32 %v1740, 0.044715
        %v1757 = vmul.f32 %v1741, 0.044715
        %v1758 = vmul.f32 %v1742, 0.044715
        %v1759 = vmul.f32 %v1743, 0.044715
        %v1760 = vmul.f32 %v1752, %v1736
        %v1761 = vmul.f32 %v1753, %v1737
        %v1762 = vmul.f32 %v1754, %v1738
        %v1763 = vmul.f32 %v1755, %v1739
        %v1764 = vmul.f32 %v1756, %v1740
        %v1765 = vmul.f32 %v1757, %v1741
        %v1766 = vmul.f32 %v1758, %v1742
        %v1767 = vmul.f32 %v1759, %v1743
        %v1768 = vmul.f32 %v1760, %v1736
        %v1769 = vmul.f32 %v1761, %v1737
        %v1770 = vmul.f32 %v1762, %v1738
        %v1771 = vmul.f32 %v1763, %v1739
        %v1772 = vmul.f32 %v1764, %v1740
        %v1773 = vmul.f32 %v1765, %v1741
        %v1774 = vmul.f32 %v1766, %v1742
        %v1775 = vmul.f32 %v1767, %v1743
        %v1776 = vadd.f32 %v1736, %v1768
        %v1777 = vadd.f32 %v1737, %v1769
        %v1778 = vadd.f32 %v1738, %v1770
        %v1779 = vadd.f32 %v1739, %v1771
        %v1780 = vadd.f32 %v1740, %v1772
        %v1781 = vadd.f32 %v1741, %v1773
        %v1782 = vadd.f32 %v1742, %v1774
        %v1783 = vadd.f32 %v1743, %v1775
        %v1784 = vmul.f32 %v1776, 0.7978846
        %v1785 = vmul.f32 %v1777, 0.7978846
        %v1786 = vmul.f32 %v1778, 0.7978846
        %v1787 = vmul.f32 %v1779, 0.7978846
        %v1788 = vmul.f32 %v1780, 0.7978846
        %v1789 = vmul.f32 %v1781, 0.7978846
        %v1790 = vmul.f32 %v1782, 0.7978846
        %v1791 = vmul.f32 %v1783, 0.7978846
        %v1792 = vtanh.pop %v1784
        %v1793 = vtanh.pop %v1785
        %v1794 = vtanh.pop %v1786
        %v1795 = vtanh.pop %v1787
        %v1796 = vtanh.pop %v1788
        %v1797 = vtanh.pop %v1789
        %v1798 = vtanh.pop %v1790
        %v1799 = vtanh.pop %v1791
        %v1800 = vadd.f32 %v1792, 1.0
        %v1801 = vadd.f32 %v1793, 1.0
        %v1802 = vadd.f32 %v1794, 1.0
        %v1803 = vadd.f32 %v1795, 1.0
        %v1804 = vadd.f32 %v1796, 1.0
        %v1805 = vadd.f32 %v1797, 1.0
        %v1806 = vadd.f32 %v1798, 1.0
        %v1807 = vadd.f32 %v1799, 1.0
        %v1808 = vmul.f32 %v1744, %v1800
        %v1809 = vmul.f32 %v1745, %v1801
        %v1810 = vmul.f32 %v1746, %v1802
        %v1811 = vmul.f32 %v1747, %v1803
        %v1812 = vmul.f32 %v1748, %v1804
        %v1813 = vmul.f32 %v1749, %v1805
        %v1814 = vmul.f32 %v1750, %v1806
        %v1815 = vmul.f32 %v1751, %v1807
        %1816 = vst [vmem:[%s282 + $0x3] sm:$0x1] %v1808
        %1817 = vst [vmem:[%s282 + $0xb] sm:$0x1] %v1809
        %1818 = vst [vmem:[%s282 + $0x13] sm:$0x1] %v1810
        %1819 = vst [vmem:[%s282 + $0x1b] sm:$0x1] %v1811
        %1820 = vst [vmem:[%s282 + $0x23] sm:$0x1] %v1812
        %1821 = vst [vmem:[%s282 + $0x2b] sm:$0x1] %v1813
        %1822 = vst [vmem:[%s282 + $0x33] sm:$0x1] %v1814
        %1823 = vst [vmem:[%s282 + $0x3b] sm:$0x1] %v1815
        %v1824 = vmul.f32 %v1181, %v1351
        %v1825 = vmul.f32 %v1182, %v1353
        %v1826 = vmul.f32 %v1183, %v1354
        %v1827 = vmul.f32 %v1184, %v1355
        %v1828 = vmul.f32 %v1185, %v1356
        %v1829 = vmul.f32 %v1186, %v1357
        %v1830 = vmul.f32 %v1187, %v1358
        %v1831 = vmul.f32 %v1188, %v1359
        %v1832 = vld [vmem:[#allocation9 + $0x4] sm:$0x1]
        %v1833 = vlaneseq
        %v1834 = vshrl.u32 %v1833, 7
        %v1835 = vsub.s32 0, %v1834
        %v1836 = vrot.slane %v1832, %v1835
        %v1837 = vmul.f32 %v1824, %v1836
        %v1838 = vmul.f32 %v1825, %v1836
        %v1839 = vmul.f32 %v1826, %v1836
        %v1840 = vmul.f32 %v1827, %v1836
        %v1841 = vmul.f32 %v1828, %v1836
        %v1842 = vmul.f32 %v1829, %v1836
        %v1843 = vmul.f32 %v1830, %v1836
        %v1844 = vmul.f32 %v1831, %v1836
        %v1845 = vld [vmem:[%s4 + $0x4] sm:$0x1]
        %v1846 = vlaneseq
        %v1847 = vshrl.u32 %v1846, 7
        %v1848 = vsub.s32 0, %v1847
        %v1849 = vrot.slane %v1845, %v1848
        %v1850 = vadd.f32 %v1837, %v1849
        %v1851 = vadd.f32 %v1838, %v1849
        %v1852 = vadd.f32 %v1839, %v1849
        %v1853 = vadd.f32 %v1840, %v1849
        %v1854 = vadd.f32 %v1841, %v1849
        %v1855 = vadd.f32 %v1842, %v1849
        %v1856 = vadd.f32 %v1843, %v1849
        %v1857 = vadd.f32 %v1844, %v1849
        %v1858 = vmul.f32 %v1850, 0.5
        %v1859 = vmul.f32 %v1851, 0.5
        %v1860 = vmul.f32 %v1852, 0.5
        %v1861 = vmul.f32 %v1853, 0.5
        %v1862 = vmul.f32 %v1854, 0.5
        %v1863 = vmul.f32 %v1855, 0.5
        %v1864 = vmul.f32 %v1856, 0.5
        %v1865 = vmul.f32 %v1857, 0.5
        %v1866 = vmul.f32 %v1850, 0.044715
        %v1867 = vmul.f32 %v1851, 0.044715
        %v1868 = vmul.f32 %v1852, 0.044715
        %v1869 = vmul.f32 %v1853, 0.044715
        %v1870 = vmul.f32 %v1854, 0.044715
        %v1871 = vmul.f32 %v1855, 0.044715
        %v1872 = vmul.f32 %v1856, 0.044715
        %v1873 = vmul.f32 %v1857, 0.044715
        %v1874 = vmul.f32 %v1866, %v1850
        %v1875 = vmul.f32 %v1867, %v1851
        %v1876 = vmul.f32 %v1868, %v1852
        %v1877 = vmul.f32 %v1869, %v1853
        %v1878 = vmul.f32 %v1870, %v1854
        %v1879 = vmul.f32 %v1871, %v1855
        %v1880 = vmul.f32 %v1872, %v1856
        %v1881 = vmul.f32 %v1873, %v1857
        %v1882 = vmul.f32 %v1874, %v1850
        %v1883 = vmul.f32 %v1875, %v1851
        %v1884 = vmul.f32 %v1876, %v1852
        %v1885 = vmul.f32 %v1877, %v1853
        %v1886 = vmul.f32 %v1878, %v1854
        %v1887 = vmul.f32 %v1879, %v1855
        %v1888 = vmul.f32 %v1880, %v1856
        %v1889 = vmul.f32 %v1881, %v1857
        %v1890 = vadd.f32 %v1850, %v1882
        %v1891 = vadd.f32 %v1851, %v1883
        %v1892 = vadd.f32 %v1852, %v1884
        %v1893 = vadd.f32 %v1853, %v1885
        %v1894 = vadd.f32 %v1854, %v1886
        %v1895 = vadd.f32 %v1855, %v1887
        %v1896 = vadd.f32 %v1856, %v1888
        %v1897 = vadd.f32 %v1857, %v1889
        %v1898 = vmul.f32 %v1890, 0.7978846
        %v1899 = vmul.f32 %v1891, 0.7978846
        %v1900 = vmul.f32 %v1892, 0.7978846
        %v1901 = vmul.f32 %v1893, 0.7978846
        %v1902 = vmul.f32 %v1894, 0.7978846
        %v1903 = vmul.f32 %v1895, 0.7978846
        %v1904 = vmul.f32 %v1896, 0.7978846
        %v1905 = vmul.f32 %v1897, 0.7978846
        %v1906 = vtanh.pop %v1898
        %v1907 = vtanh.pop %v1899
        %v1908 = vtanh.pop %v1900
        %v1909 = vtanh.pop %v1901
        %v1910 = vtanh.pop %v1902
        %v1911 = vtanh.pop %v1903
        %v1912 = vtanh.pop %v1904
        %v1913 = vtanh.pop %v1905
        %v1914 = vadd.f32 %v1906, 1.0
        %v1915 = vadd.f32 %v1907, 1.0
        %v1916 = vadd.f32 %v1908, 1.0
        %v1917 = vadd.f32 %v1909, 1.0
        %v1918 = vadd.f32 %v1910, 1.0
        %v1919 = vadd.f32 %v1911, 1.0
        %v1920 = vadd.f32 %v1912, 1.0
        %v1921 = vadd.f32 %v1913, 1.0
        %v1922 = vmul.f32 %v1858, %v1914
        %v1923 = vmul.f32 %v1859, %v1915
        %v1924 = vmul.f32 %v1860, %v1916
        %v1925 = vmul.f32 %v1861, %v1917
        %v1926 = vmul.f32 %v1862, %v1918
        %v1927 = vmul.f32 %v1863, %v1919
        %v1928 = vmul.f32 %v1864, %v1920
        %v1929 = vmul.f32 %v1865, %v1921
        %1930 = vst [vmem:[%s282 + $0x4] sm:$0x1] %v1922
        %1931 = vst [vmem:[%s282 + $0xc] sm:$0x1] %v1923
        %1932 = vst [vmem:[%s282 + $0x14] sm:$0x1] %v1924
        %1933 = vst [vmem:[%s282 + $0x1c] sm:$0x1] %v1925
        %1934 = vst [vmem:[%s282 + $0x24] sm:$0x1] %v1926
        %1935 = vst [vmem:[%s282 + $0x2c] sm:$0x1] %v1927
        %1936 = vst [vmem:[%s282 + $0x34] sm:$0x1] %v1928
        %1937 = vst [vmem:[%s282 + $0x3c] sm:$0x1] %v1929
        %v1938 = vmul.f32 %v1223, %v1351
        %v1939 = vmul.f32 %v1224, %v1353
        %v1940 = vmul.f32 %v1225, %v1354
        %v1941 = vmul.f32 %v1226, %v1355
        %v1942 = vmul.f32 %v1227, %v1356
        %v1943 = vmul.f32 %v1228, %v1357
        %v1944 = vmul.f32 %v1229, %v1358
        %v1945 = vmul.f32 %v1230, %v1359
        %v1946 = vld [vmem:[#allocation9 + $0x5] sm:$0x1]
        %v1947 = vlaneseq
        %v1948 = vshrl.u32 %v1947, 7
        %v1949 = vsub.s32 0, %v1948
        %v1950 = vrot.slane %v1946, %v1949
        %v1951 = vmul.f32 %v1938, %v1950
        %v1952 = vmul.f32 %v1939, %v1950
        %v1953 = vmul.f32 %v1940, %v1950
        %v1954 = vmul.f32 %v1941, %v1950
        %v1955 = vmul.f32 %v1942, %v1950
        %v1956 = vmul.f32 %v1943, %v1950
        %v1957 = vmul.f32 %v1944, %v1950
        %v1958 = vmul.f32 %v1945, %v1950
        %v1959 = vld [vmem:[%s4 + $0x5] sm:$0x1]
        %v1960 = vlaneseq
        %v1961 = vshrl.u32 %v1960, 7
        %v1962 = vsub.s32 0, %v1961
        %v1963 = vrot.slane %v1959, %v1962
        %v1964 = vadd.f32 %v1951, %v1963
        %v1965 = vadd.f32 %v1952, %v1963
        %v1966 = vadd.f32 %v1953, %v1963
        %v1967 = vadd.f32 %v1954, %v1963
        %v1968 = vadd.f32 %v1955, %v1963
        %v1969 = vadd.f32 %v1956, %v1963
        %v1970 = vadd.f32 %v1957, %v1963
        %v1971 = vadd.f32 %v1958, %v1963
        %v1972 = vmul.f32 %v1964, 0.5
        %v1973 = vmul.f32 %v1965, 0.5
        %v1974 = vmul.f32 %v1966, 0.5
        %v1975 = vmul.f32 %v1967, 0.5
        %v1976 = vmul.f32 %v1968, 0.5
        %v1977 = vmul.f32 %v1969, 0.5
        %v1978 = vmul.f32 %v1970, 0.5
        %v1979 = vmul.f32 %v1971, 0.5
        %v1980 = vmul.f32 %v1964, 0.044715
        %v1981 = vmul.f32 %v1965, 0.044715
        %v1982 = vmul.f32 %v1966, 0.044715
        %v1983 = vmul.f32 %v1967, 0.044715
        %v1984 = vmul.f32 %v1968, 0.044715
        %v1985 = vmul.f32 %v1969, 0.044715
        %v1986 = vmul.f32 %v1970, 0.044715
        %v1987 = vmul.f32 %v1971, 0.044715
        %v1988 = vmul.f32 %v1980, %v1964
        %v1989 = vmul.f32 %v1981, %v1965
        %v1990 = vmul.f32 %v1982, %v1966
        %v1991 = vmul.f32 %v1983, %v1967
        %v1992 = vmul.f32 %v1984, %v1968
        %v1993 = vmul.f32 %v1985, %v1969
        %v1994 = vmul.f32 %v1986, %v1970
        %v1995 = vmul.f32 %v1987, %v1971
        %v1996 = vmul.f32 %v1988, %v1964
        %v1997 = vmul.f32 %v1989, %v1965
        %v1998 = vmul.f32 %v1990, %v1966
        %v1999 = vmul.f32 %v1991, %v1967
        %v2000 = vmul.f32 %v1992, %v1968
        %v2001 = vmul.f32 %v1993, %v1969
        %v2002 = vmul.f32 %v1994, %v1970
        %v2003 = vmul.f32 %v1995, %v1971
        %v2004 = vadd.f32 %v1964, %v1996
        %v2005 = vadd.f32 %v1965, %v1997
        %v2006 = vadd.f32 %v1966, %v1998
        %v2007 = vadd.f32 %v1967, %v1999
        %v2008 = vadd.f32 %v1968, %v2000
        %v2009 = vadd.f32 %v1969, %v2001
        %v2010 = vadd.f32 %v1970, %v2002
        %v2011 = vadd.f32 %v1971, %v2003
        %v2012 = vmul.f32 %v2004, 0.7978846
        %v2013 = vmul.f32 %v2005, 0.7978846
        %v2014 = vmul.f32 %v2006, 0.7978846
        %v2015 = vmul.f32 %v2007, 0.7978846
        %v2016 = vmul.f32 %v2008, 0.7978846
        %v2017 = vmul.f32 %v2009, 0.7978846
        %v2018 = vmul.f32 %v2010, 0.7978846
        %v2019 = vmul.f32 %v2011, 0.7978846
        %v2020 = vtanh.pop %v2012
        %v2021 = vtanh.pop %v2013
        %v2022 = vtanh.pop %v2014
        %v2023 = vtanh.pop %v2015
        %v2024 = vtanh.pop %v2016
        %v2025 = vtanh.pop %v2017
        %v2026 = vtanh.pop %v2018
        %v2027 = vtanh.pop %v2019
        %v2028 = vadd.f32 %v2020, 1.0
        %v2029 = vadd.f32 %v2021, 1.0
        %v2030 = vadd.f32 %v2022, 1.0
        %v2031 = vadd.f32 %v2023, 1.0
        %v2032 = vadd.f32 %v2024, 1.0
        %v2033 = vadd.f32 %v2025, 1.0
        %v2034 = vadd.f32 %v2026, 1.0
        %v2035 = vadd.f32 %v2027, 1.0
        %v2036 = vmul.f32 %v1972, %v2028
        %v2037 = vmul.f32 %v1973, %v2029
        %v2038 = vmul.f32 %v1974, %v2030
        %v2039 = vmul.f32 %v1975, %v2031
        %v2040 = vmul.f32 %v1976, %v2032
        %v2041 = vmul.f32 %v1977, %v2033
        %v2042 = vmul.f32 %v1978, %v2034
        %v2043 = vmul.f32 %v1979, %v2035
        %2044 = vst [vmem:[%s282 + $0x5] sm:$0x1] %v2036
        %2045 = vst [vmem:[%s282 + $0xd] sm:$0x1] %v2037
        %2046 = vst [vmem:[%s282 + $0x15] sm:$0x1] %v2038
        %2047 = vst [vmem:[%s282 + $0x1d] sm:$0x1] %v2039
        %2048 = vst [vmem:[%s282 + $0x25] sm:$0x1] %v2040
        %2049 = vst [vmem:[%s282 + $0x2d] sm:$0x1] %v2041
        %2050 = vst [vmem:[%s282 + $0x35] sm:$0x1] %v2042
        %2051 = vst [vmem:[%s282 + $0x3d] sm:$0x1] %v2043
        %v2052 = vmul.f32 %v1265, %v1351
        %v2053 = vmul.f32 %v1266, %v1353
        %v2054 = vmul.f32 %v1267, %v1354
        %v2055 = vmul.f32 %v1268, %v1355
        %v2056 = vmul.f32 %v1269, %v1356
        %v2057 = vmul.f32 %v1270, %v1357
        %v2058 = vmul.f32 %v1271, %v1358
        %v2059 = vmul.f32 %v1272, %v1359
        %v2060 = vld [vmem:[#allocation9 + $0x6] sm:$0x1]
        %v2061 = vlaneseq
        %v2062 = vshrl.u32 %v2061, 7
        %v2063 = vsub.s32 0, %v2062
        %v2064 = vrot.slane %v2060, %v2063
        %v2065 = vmul.f32 %v2052, %v2064
        %v2066 = vmul.f32 %v2053, %v2064
        %v2067 = vmul.f32 %v2054, %v2064
        %v2068 = vmul.f32 %v2055, %v2064
        %v2069 = vmul.f32 %v2056, %v2064
        %v2070 = vmul.f32 %v2057, %v2064
        %v2071 = vmul.f32 %v2058, %v2064
        %v2072 = vmul.f32 %v2059, %v2064
        %v2073 = vld [vmem:[%s4 + $0x6] sm:$0x1]
        %v2074 = vlaneseq
        %v2075 = vshrl.u32 %v2074, 7
        %v2076 = vsub.s32 0, %v2075
        %v2077 = vrot.slane %v2073, %v2076
        %v2078 = vadd.f32 %v2065, %v2077
        %v2079 = vadd.f32 %v2066, %v2077
        %v2080 = vadd.f32 %v2067, %v2077
        %v2081 = vadd.f32 %v2068, %v2077
        %v2082 = vadd.f32 %v2069, %v2077
        %v2083 = vadd.f32 %v2070, %v2077
        %v2084 = vadd.f32 %v2071, %v2077
        %v2085 = vadd.f32 %v2072, %v2077
        %v2086 = vmul.f32 %v2078, 0.5
        %v2087 = vmul.f32 %v2079, 0.5
        %v2088 = vmul.f32 %v2080, 0.5
        %v2089 = vmul.f32 %v2081, 0.5
        %v2090 = vmul.f32 %v2082, 0.5
        %v2091 = vmul.f32 %v2083, 0.5
        %v2092 = vmul.f32 %v2084, 0.5
        %v2093 = vmul.f32 %v2085, 0.5
        %v2094 = vmul.f32 %v2078, 0.044715
        %v2095 = vmul.f32 %v2079, 0.044715
        %v2096 = vmul.f32 %v2080, 0.044715
        %v2097 = vmul.f32 %v2081, 0.044715
        %v2098 = vmul.f32 %v2082, 0.044715
        %v2099 = vmul.f32 %v2083, 0.044715
        %v2100 = vmul.f32 %v2084, 0.044715
        %v2101 = vmul.f32 %v2085, 0.044715
        %v2102 = vmul.f32 %v2094, %v2078
        %v2103 = vmul.f32 %v2095, %v2079
        %v2104 = vmul.f32 %v2096, %v2080
        %v2105 = vmul.f32 %v2097, %v2081
        %v2106 = vmul.f32 %v2098, %v2082
        %v2107 = vmul.f32 %v2099, %v2083
        %v2108 = vmul.f32 %v2100, %v2084
        %v2109 = vmul.f32 %v2101, %v2085
        %v2110 = vmul.f32 %v2102, %v2078
        %v2111 = vmul.f32 %v2103, %v2079
        %v2112 = vmul.f32 %v2104, %v2080
        %v2113 = vmul.f32 %v2105, %v2081
        %v2114 = vmul.f32 %v2106, %v2082
        %v2115 = vmul.f32 %v2107, %v2083
        %v2116 = vmul.f32 %v2108, %v2084
        %v2117 = vmul.f32 %v2109, %v2085
        %v2118 = vadd.f32 %v2078, %v2110
        %v2119 = vadd.f32 %v2079, %v2111
        %v2120 = vadd.f32 %v2080, %v2112
        %v2121 = vadd.f32 %v2081, %v2113
        %v2122 = vadd.f32 %v2082, %v2114
        %v2123 = vadd.f32 %v2083, %v2115
        %v2124 = vadd.f32 %v2084, %v2116
        %v2125 = vadd.f32 %v2085, %v2117
        %v2126 = vmul.f32 %v2118, 0.7978846
        %v2127 = vmul.f32 %v2119, 0.7978846
        %v2128 = vmul.f32 %v2120, 0.7978846
        %v2129 = vmul.f32 %v2121, 0.7978846
        %v2130 = vmul.f32 %v2122, 0.7978846
        %v2131 = vmul.f32 %v2123, 0.7978846
        %v2132 = vmul.f32 %v2124, 0.7978846
        %v2133 = vmul.f32 %v2125, 0.7978846
        %v2134 = vtanh.pop %v2126
        %v2135 = vtanh.pop %v2127
        %v2136 = vtanh.pop %v2128
        %v2137 = vtanh.pop %v2129
        %v2138 = vtanh.pop %v2130
        %v2139 = vtanh.pop %v2131
        %v2140 = vtanh.pop %v2132
        %v2141 = vtanh.pop %v2133
        %v2142 = vadd.f32 %v2134, 1.0
        %v2143 = vadd.f32 %v2135, 1.0
        %v2144 = vadd.f32 %v2136, 1.0
        %v2145 = vadd.f32 %v2137, 1.0
        %v2146 = vadd.f32 %v2138, 1.0
        %v2147 = vadd.f32 %v2139, 1.0
        %v2148 = vadd.f32 %v2140, 1.0
        %v2149 = vadd.f32 %v2141, 1.0
        %v2150 = vmul.f32 %v2086, %v2142
        %v2151 = vmul.f32 %v2087, %v2143
        %v2152 = vmul.f32 %v2088, %v2144
        %v2153 = vmul.f32 %v2089, %v2145
        %v2154 = vmul.f32 %v2090, %v2146
        %v2155 = vmul.f32 %v2091, %v2147
        %v2156 = vmul.f32 %v2092, %v2148
        %v2157 = vmul.f32 %v2093, %v2149
        %2158 = vst [vmem:[%s282 + $0x6] sm:$0x1] %v2150
        %2159 = vst [vmem:[%s282 + $0xe] sm:$0x1] %v2151
        %2160 = vst [vmem:[%s282 + $0x16] sm:$0x1] %v2152
        %2161 = vst [vmem:[%s282 + $0x1e] sm:$0x1] %v2153
        %2162 = vst [vmem:[%s282 + $0x26] sm:$0x1] %v2154
        %2163 = vst [vmem:[%s282 + $0x2e] sm:$0x1] %v2155
        %2164 = vst [vmem:[%s282 + $0x36] sm:$0x1] %v2156
        %2165 = vst [vmem:[%s282 + $0x3e] sm:$0x1] %v2157
        %v2166 = vmul.f32 %v1307, %v1351
        %v2167 = vmul.f32 %v1308, %v1353
        %v2168 = vmul.f32 %v1309, %v1354
        %v2169 = vmul.f32 %v1310, %v1355
        %v2170 = vmul.f32 %v1311, %v1356
        %v2171 = vmul.f32 %v1312, %v1357
        %v2172 = vmul.f32 %v1313, %v1358
        %v2173 = vmul.f32 %v1314, %v1359
        %v2174 = vld [vmem:[#allocation9 + $0x7] sm:$0x1]
        %v2175 = vlaneseq
        %v2176 = vshrl.u32 %v2175, 7
        %v2177 = vsub.s32 0, %v2176
        %v2178 = vrot.slane %v2174, %v2177
        %v2179 = vmul.f32 %v2166, %v2178
        %v2180 = vmul.f32 %v2167, %v2178
        %v2181 = vmul.f32 %v2168, %v2178
        %v2182 = vmul.f32 %v2169, %v2178
        %v2183 = vmul.f32 %v2170, %v2178
        %v2184 = vmul.f32 %v2171, %v2178
        %v2185 = vmul.f32 %v2172, %v2178
        %v2186 = vmul.f32 %v2173, %v2178
        %v2187 = vld [vmem:[%s4 + $0x7] sm:$0x1]
        %v2188 = vlaneseq
        %v2189 = vshrl.u32 %v2188, 7
        %v2190 = vsub.s32 0, %v2189
        %v2191 = vrot.slane %v2187, %v2190
        %v2192 = vadd.f32 %v2179, %v2191
        %v2193 = vadd.f32 %v2180, %v2191
        %v2194 = vadd.f32 %v2181, %v2191
        %v2195 = vadd.f32 %v2182, %v2191
        %v2196 = vadd.f32 %v2183, %v2191
        %v2197 = vadd.f32 %v2184, %v2191
        %v2198 = vadd.f32 %v2185, %v2191
        %v2199 = vadd.f32 %v2186, %v2191
        %v2200 = vmul.f32 %v2192, 0.5
        %v2201 = vmul.f32 %v2193, 0.5
        %v2202 = vmul.f32 %v2194, 0.5
        %v2203 = vmul.f32 %v2195, 0.5
        %v2204 = vmul.f32 %v2196, 0.5
        %v2205 = vmul.f32 %v2197, 0.5
        %v2206 = vmul.f32 %v2198, 0.5
        %v2207 = vmul.f32 %v2199, 0.5
        %v2208 = vmul.f32 %v2192, 0.044715
        %v2209 = vmul.f32 %v2193, 0.044715
        %v2210 = vmul.f32 %v2194, 0.044715
        %v2211 = vmul.f32 %v2195, 0.044715
        %v2212 = vmul.f32 %v2196, 0.044715
        %v2213 = vmul.f32 %v2197, 0.044715
        %v2214 = vmul.f32 %v2198, 0.044715
        %v2215 = vmul.f32 %v2199, 0.044715
        %v2216 = vmul.f32 %v2208, %v2192
        %v2217 = vmul.f32 %v2209, %v2193
        %v2218 = vmul.f32 %v2210, %v2194
        %v2219 = vmul.f32 %v2211, %v2195
        %v2220 = vmul.f32 %v2212, %v2196
        %v2221 = vmul.f32 %v2213, %v2197
        %v2222 = vmul.f32 %v2214, %v2198
        %v2223 = vmul.f32 %v2215, %v2199
        %v2224 = vmul.f32 %v2216, %v2192
        %v2225 = vmul.f32 %v2217, %v2193
        %v2226 = vmul.f32 %v2218, %v2194
        %v2227 = vmul.f32 %v2219, %v2195
        %v2228 = vmul.f32 %v2220, %v2196
        %v2229 = vmul.f32 %v2221, %v2197
        %v2230 = vmul.f32 %v2222, %v2198
        %v2231 = vmul.f32 %v2223, %v2199
        %v2232 = vadd.f32 %v2192, %v2224
        %v2233 = vadd.f32 %v2193, %v2225
        %v2234 = vadd.f32 %v2194, %v2226
        %v2235 = vadd.f32 %v2195, %v2227
        %v2236 = vadd.f32 %v2196, %v2228
        %v2237 = vadd.f32 %v2197, %v2229
        %v2238 = vadd.f32 %v2198, %v2230
        %v2239 = vadd.f32 %v2199, %v2231
        %v2240 = vmul.f32 %v2232, 0.7978846
        %v2241 = vmul.f32 %v2233, 0.7978846
        %v2242 = vmul.f32 %v2234, 0.7978846
        %v2243 = vmul.f32 %v2235, 0.7978846
        %v2244 = vmul.f32 %v2236, 0.7978846
        %v2245 = vmul.f32 %v2237, 0.7978846
        %v2246 = vmul.f32 %v2238, 0.7978846
        %v2247 = vmul.f32 %v2239, 0.7978846
        %v2248 = vtanh.pop %v2240
        %v2249 = vtanh.pop %v2241
        %v2250 = vtanh.pop %v2242
        %v2251 = vtanh.pop %v2243
        %v2252 = vtanh.pop %v2244
        %v2253 = vtanh.pop %v2245
        %v2254 = vtanh.pop %v2246
        %v2255 = vtanh.pop %v2247
        %v2256 = vadd.f32 %v2248, 1.0
        %v2257 = vadd.f32 %v2249, 1.0
        %v2258 = vadd.f32 %v2250, 1.0
        %v2259 = vadd.f32 %v2251, 1.0
        %v2260 = vadd.f32 %v2252, 1.0
        %v2261 = vadd.f32 %v2253, 1.0
        %v2262 = vadd.f32 %v2254, 1.0
        %v2263 = vadd.f32 %v2255, 1.0
        %v2264 = vmul.f32 %v2200, %v2256
        %v2265 = vmul.f32 %v2201, %v2257
        %v2266 = vmul.f32 %v2202, %v2258
        %v2267 = vmul.f32 %v2203, %v2259
        %v2268 = vmul.f32 %v2204, %v2260
        %v2269 = vmul.f32 %v2205, %v2261
        %v2270 = vmul.f32 %v2206, %v2262
        %v2271 = vmul.f32 %v2207, %v2263
        %2272 = vst [vmem:[%s282 + $0x7] sm:$0x1] %v2264
        %2273 = vst [vmem:[%s282 + $0xf] sm:$0x1] %v2265
        %2274 = vst [vmem:[%s282 + $0x17] sm:$0x1] %v2266
        %2275 = vst [vmem:[%s282 + $0x1f] sm:$0x1] %v2267
        %2276 = vst [vmem:[%s282 + $0x27] sm:$0x1] %v2268
        %2277 = vst [vmem:[%s282 + $0x2f] sm:$0x1] %v2269
        %2278 = vst [vmem:[%s282 + $0x37] sm:$0x1] %v2270
        %2279 = vst [vmem:[%s282 + $0x3f] sm:$0x1] %v2271
        %s2280 = sand.u32 %s143, 1
        %s2281 = scalar_lea.sflag [#allocation4], %s2280
        %s2282 = sand.u32 %s143, 1
        %s2283 = smul.addr %s2282, 64
        %s2284 = scalar_lea.vmem [#allocation11], %s2283
        // Predicated region
        $region57: #{_lambda_.1} parent=39 // pred_check
          %p2285 = pneg %p153
        $region58: #{_lambda_.1} parent=39 // pred_check_branch
          %2287 = sbr.rel (%p2285) target = $region60
        $region59: #{_lambda_.1} parent=39 // pred_region
          %s2288 = smul.u32 8, %s25
          %s2290 = ssub.s32 1024, 1024
          %2291 = vsyncadd %s2281, %s2290
          %s2292 = smul.addr %s2288, 128
          %s2293 = scalar_lea.hbm %s5, %s2292
          %s2294 = sshll.u32 %s2284, 4
          %s2295 = int_to_ptr.vmem [resolvable:$true] %s2294
          %2300 = dma.vmem_to_hbm [thread:$0]  %s2295, 1024, %s2293, %s2281, 128, 128, 8
        $region60: #{_lambda_.1} parent=39 // pred_fallthru
          _
      $region40: #{_lambda_.1} parent=5 // pred_fallthru
        _
      %p2301 = scmp.le.s32.totalorder 2, %s20
      // Predicated region
      $region61: #{_lambda_.1} parent=5 // pred_check
        %p2302 = pneg %p2301
      $region62: #{_lambda_.1} parent=5 // pred_check_branch
        %2304 = sbr.rel (%p2302) target = $region64
      $region63: #{_lambda_.1} parent=5 // pred_region
        %s2305 = ssub.s32 %s20, 2
        // Predicated region
        $region65: #{_lambda_.1} parent=63 // pred_check
          %p2306 = pneg %p159
        $region66: #{_lambda_.1} parent=63 // pred_check_branch
          %2308 = sbr.rel (%p2306) target = $region68
        $region67: #{_lambda_.1} parent=63 // pred_region
          %s2309 = sand.u32 %s144, 1
          %s2310 = scalar_lea.sflag [#allocation4], %s2309
          %s2311 = sand.u32 %s144, 1
          %s2312 = smul.addr %s2311, 64
          %s2313 = scalar_lea.vmem [#allocation11], %s2312
          %2314 = dma.done %s2310, 1024
        $region68: #{_lambda_.1} parent=63 // pred_fallthru
          _
      $region64: #{_lambda_.1} parent=5 // pred_fallthru
        _
    $region6: #{_lambda_.1} parent=1 // loop_footer
      %s24 = sadd.s32 1, %s20
    $region7: #{_lambda_.1} parent=1 // loop_footer_branch
      %19 = sbr.rel target = $region3
    $region8: #{_lambda_.1} parent=1 // loop_exit
      _
    %2315 = vsyncpa [#allocation3], 1
    %s2316 = scalar_lea.sflag [#allocation3], 1
    %2317 = vsyncpa %s2316, 1
    %2318 = vsyncpa [#allocation10], 1
    %2319 = vsyncpa [#allocation4], 1
    %s2320 = scalar_lea.sflag [#allocation4], 1
    %2321 = vsyncpa %s2320, 1
    %2322 = vsyncpa [#allocation5], 1
    %s2323 = scalar_lea.sflag [#allocation5], 1
    %2324 = vsyncpa %s2323, 1
    %2325 = vsyncpa [#allocation8], 1

</llo_original>
